<compile_context>
chip_gen: v7x
topology: tpu7x:2x2x1
jax: 0.10.0
libtpu: 0.0.40
codegen_flags: <defaults>
</compile_context>

<pallas_src>
import jax
import jax.numpy as jnp
from jax.experimental import pallas as pl
from jax.experimental.pallas import tpu as pltpu

# ---------------- configuration (small, deterministic) ----------------
B = 2              # batch (clips)
T = 8              # clip_len
C = 3              # RGB channels
H = 16
W = 16
CHW = C * H * W    # 768 = 6 * 128 (lane dense)
DP = 128           # feature dim (self._d stand-in), lane-aligned
NUM_CLASSES = 4    # args.num_classes
K = NUM_CLASSES + 1
KPAD = 128         # lane-padded classifier width
DS = 2             # downsample_factor
NUM_TCN_LAYERS = 3
NTAP = 3           # temporal conv taps (t-1, t, t+1)

assert T % DS == 0
assert DS == 2  # TODO(synk): in-register pooling trick below is DS==2 only

_MEAN = (0.485, 0.456, 0.406)
_STD = (0.229, 0.224, 0.225)


# ---------------- fused kernel: features -> TCN -> frame FC ----------------
def fused_kernel(x_ref, wf_ref, tw_ref, fw_ref, b_ref, o_ref):
    # x_ref : (T, CHW)          f32, raw pixels in [0,255] of ONE batch element
    # wf_ref: (CHW, DP)         bf16, projection with (x/255-mean)/std folded in
    # tw_ref: (L*3, DP, DP)     bf16, taps ordered [W_prev, W_cur, W_next] per layer
    # fw_ref: (DP, KPAD)        bf16, classifier, lane-padded
    # b_ref : (L+2, DP)         f32, row 0 feature bias, rows 1..L tcn, row L+1 fc
    # o_ref : (T, KPAD)         f32

    # ---- feature head (bf16 MXU, f32 accumulate; elementwise in f32) ----
    feat = jnp.dot(x_ref[...].astype(jnp.bfloat16), wf_ref[...],
                   preferred_element_type=jnp.float32)
    feat = jnp.maximum(feat + b_ref[0:1, :], 0.0)                    # (T, DP) f32

    row = jax.lax.broadcasted_iota(jnp.int32, (T, DP), 0)

    # ---- temporal avg-pool by DS=2, kept at full T resolution ----
    # Each DS-group of rows becomes constant == its mean, so the nearest
    # upsample at the end is a no-op (exact equivalent of pool->TCN->upsample).
    is_even = (row % 2) == 0
    nbr = jnp.where(is_even,
                    pltpu.roll(feat, shift=T - 1, axis=0),           # feat[t+1]
                    pltpu.roll(feat, shift=1, axis=0))               # feat[t-1]
    h = 0.5 * (feat + nbr)                                           # (T, DP) f32

    first_grp = row < DS            # no previous downsampled step exists
    last_grp = row >= (T - DS)      # no next downsampled step exists

    # ---- 3 residual temporal conv layers (k=3, 'same' zero pad, ReLU) ----
    # Each layer = three lane-aligned (T,DP)@(DP,DP) bf16 dots (no 3D concat).
    for l in range(NUM_TCN_LAYERS):
        h_prev = jnp.where(first_grp, 0.0, pltpu.roll(h, shift=DS, axis=0))
        h_next = jnp.where(last_grp, 0.0, pltpu.roll(h, shift=T - DS, axis=0))
        y = jnp.dot(h_prev.astype(jnp.bfloat16), tw_ref[NTAP * l + 0],
                    preferred_element_type=jnp.float32)
        y = y + jnp.dot(h.astype(jnp.bfloat16), tw_ref[NTAP * l + 1],
                        preferred_element_type=jnp.float32)
        y = y + jnp.dot(h_next.astype(jnp.bfloat16), tw_ref[NTAP * l + 2],
                        preferred_element_type=jnp.float32)
        y = y + b_ref[1 + l:2 + l, :]
        h = jnp.maximum(y, 0.0) + h     # residual (assumed TCNAggregator form)

    # ---- frame classifier (lane-padded 128-wide output -> unmasked stores) ----
    o_ref[...] = (jnp.dot(h.astype(jnp.bfloat16), fw_ref[...],
                          preferred_element_type=jnp.float32)
                  + b_ref[NUM_TCN_LAYERS + 1:NUM_TCN_LAYERS + 2, :])


def fused_forward(x2d, params):
    # grid over batch: one clip-row slab per step; weights (constant index_map)
    # stay VMEM-resident across steps; "parallel" lets v7x split across its 2 TCs.
    return pl.pallas_call(
        fused_kernel,
        out_shape=jax.ShapeDtypeStruct((B * T, KPAD), jnp.float32),
        grid=(B,),
        in_specs=[
            pl.BlockSpec((T, CHW), lambda b: (b, 0)),                       # pixels
            pl.BlockSpec((CHW, DP), lambda b: (0, 0)),                      # w_feat
            pl.BlockSpec((NUM_TCN_LAYERS * NTAP, DP, DP), lambda b: (0, 0, 0)),  # tcn_w
            pl.BlockSpec((DP, KPAD), lambda b: (0, 0)),                     # fc_w
            pl.BlockSpec((NUM_TCN_LAYERS + 2, DP), lambda b: (0, 0)),       # biases
        ],
        out_specs=pl.BlockSpec((T, KPAD), lambda b: (b, 0)),
        compiler_params=pltpu.CompilerParams(
            dimension_semantics=("parallel",)),
    )(x2d, params["w_feat"], params["tcn_w"], params["fc_w"], params["biases"])


# ---------------- full forward ----------------
def model_forward(x, params):
    # x: (B, T, C, H, W) float32, values in [0, 255]
    x2d = x.reshape(B * T, CHW)                  # lane-dense frame rows (f32)
    out = fused_forward(x2d, params)             # (B*T, KPAD)
    return out.reshape(B, T, KPAD)[..., :K]      # (B, T, num_classes + 1)


def init_params(key):
    k1, k2, k3 = jax.random.split(key, 3)

    # feature projection (RegNetY stand-in), f32 master weights
    w_feat = 0.02 * jax.random.normal(k1, (CHW, DP), jnp.float32)

    # fold normalize (x/255) + Normalize(mean, std) into the projection:
    #   ((x/255 - mean)/std) @ W  ==  x @ (W / (255*std)) - (mean/std) @ W
    mean = jnp.asarray(_MEAN, jnp.float32)
    std = jnp.asarray(_STD, jnp.float32)
    scale_e = jnp.repeat(1.0 / (255.0 * std), H * W)       # (CHW,), channel-major
    shift_e = jnp.repeat(mean / std, H * W)                 # (CHW,)
    w_feat_folded = (w_feat * scale_e[:, None]).astype(jnp.bfloat16)
    b_feat_folded = -(shift_e @ w_feat)                     # (DP,), f32

    # TCN weights: L layers x 3 taps [prev, cur, next], each (DP, DP), bf16
    tcn_w = (0.05 * jax.random.normal(
        k2, (NUM_TCN_LAYERS * NTAP, DP, DP), jnp.float32)).astype(jnp.bfloat16)

    # frame classifier, lane-padded to KPAD (zeros beyond K), bf16
    fc_w = 0.02 * jax.random.normal(k3, (DP, K), jnp.float32)
    fc_w_p = jnp.zeros((DP, KPAD), jnp.float32).at[:, :K].set(fc_w)
    fc_w_p = fc_w_p.astype(jnp.bfloat16)

    # merged biases (single DMA): row 0 feature, rows 1..L tcn, row L+1 classifier
    biases = jnp.zeros((NUM_TCN_LAYERS + 2, DP), jnp.float32)
    biases = biases.at[0, :].set(b_feat_folded)

    return {"w_feat": w_feat_folded, "tcn_w": tcn_w, "fc_w": fc_w_p,
            "biases": biases}


if __name__ == "__main__":
    key = jax.random.PRNGKey(0)
    kx, kp = jax.random.split(key)
    x = jax.random.uniform(kx, (B, T, C, H, W), jnp.float32,
                           minval=0.0, maxval=255.0)
    params = init_params(kp)

    logits = jax.jit(model_forward)(x, params)
    logits = jax.block_until_ready(logits)

    assert logits.shape == (B, T, K), logits.shape
    assert bool(jnp.all(jnp.isfinite(logits)))
    print("KERNEL_OK")
</pallas_src>

<mosaic_0001>
module attributes {stable_mosaic.version = 11 : i64} {
  func.func @fused_kernel(%arg0: i32, %arg1: memref<8x768xf32, #tpu.memory_space<vmem>>, %arg2: memref<768x128xbf16, #tpu.memory_space<vmem>>, %arg3: memref<9x128x128xbf16, #tpu.memory_space<vmem>>, %arg4: memref<128x128xbf16, #tpu.memory_space<vmem>>, %arg5: memref<5x128xf32, #tpu.memory_space<vmem>>, %arg6: memref<8x128xf32, #tpu.memory_space<vmem>>) attributes {dimension_semantics = [#tpu.dimension_semantics<parallel>], iteration_bounds = array<i64: 2>, scalar_prefetch = 0 : i64, scratch_operands = 0 : i64, tpu.core_type = #tpu.core_type<tc>, window_params = [{transform_indices = @transform_0, window_bounds = array<i64: 8, 768>}, {pipeline_mode = #tpu.pipeline_mode<synchronous>, transform_indices = @transform_1, window_bounds = array<i64: 768, 128>}, {pipeline_mode = #tpu.pipeline_mode<synchronous>, transform_indices = @transform_2, window_bounds = array<i64: 9, 128, 128>}, {pipeline_mode = #tpu.pipeline_mode<synchronous>, transform_indices = @transform_3, window_bounds = array<i64: 128, 128>}, {pipeline_mode = #tpu.pipeline_mode<synchronous>, transform_indices = @transform_4, window_bounds = array<i64: 5, 128>}, {transform_indices = @transform_5, window_bounds = array<i64: 8, 128>}]} {
    %c0 = arith.constant 0 : index
    %c0_0 = arith.constant 0 : index
    %0 = vector.load %arg1[%c0, %c0_0] : memref<8x768xf32, #tpu.memory_space<vmem>>, vector<8x768xf32>
    %1 = arith.truncf %0 : vector<8x768xf32> to vector<8x768xbf16>
    %c0_1 = arith.constant 0 : index
    %c0_2 = arith.constant 0 : index
    %2 = vector.load %arg2[%c0_1, %c0_2] : memref<768x128xbf16, #tpu.memory_space<vmem>>, vector<768x128xbf16>
    %cst = arith.constant dense<0.000000e+00> : vector<8x128xf32>
    %3 = tpu.matmul %1, %2, %cst {dimension_numbers = #tpu.dot_dimension_numbers<[1], [0], [0], [1], [0, 0, 1, 1], [], []>} : vector<8x768xbf16>, vector<768x128xbf16>, vector<8x128xf32> -> vector<8x128xf32>
    %c0_3 = arith.constant 0 : index
    %c0_4 = arith.constant 0 : index
    %4 = vector.load %arg5[%c0_3, %c0_4] : memref<5x128xf32, #tpu.memory_space<vmem>>, vector<1x128xf32>
    %5 = vector.broadcast %4 : vector<1x128xf32> to vector<8x128xf32>
    %6 = arith.addf %3, %5 : vector<8x128xf32>
    %cst_5 = arith.constant 0.000000e+00 : f32
    %7 = vector.broadcast %cst_5 : f32 to vector<8x128xf32>
    %8 = arith.maximumf %6, %7 : vector<8x128xf32>
    %9 = tpu.iota {dimensions = array<i32: 0>} : vector<8x128xi32>
    %c2_i32 = arith.constant 2 : i32
    %c0_i32 = arith.constant 0 : i32
    %10 = arith.cmpi eq, %c2_i32, %c0_i32 : i32
    %c1_i32 = arith.constant 1 : i32
    %11 = arith.select %10, %c1_i32, %c2_i32 : i32
    %12 = vector.broadcast %11 : i32 to vector<8x128xi32>
    %13 = arith.remsi %9, %12 : vector<8x128xi32>
    %c0_i32_6 = arith.constant 0 : i32
    %14 = vector.broadcast %c0_i32_6 : i32 to vector<8x128xi32>
    %15 = arith.cmpi ne, %13, %14 : vector<8x128xi32>
    %c0_i32_7 = arith.constant 0 : i32
    %16 = vector.broadcast %c0_i32_7 : i32 to vector<8x128xi32>
    %17 = arith.cmpi slt, %13, %16 : vector<8x128xi32>
    %c0_i32_8 = arith.constant 0 : i32
    %18 = arith.cmpi slt, %11, %c0_i32_8 : i32
    %19 = vector.broadcast %18 : i1 to vector<8x128xi1>
    %20 = vector.broadcast %19 : vector<8x128xi1> to vector<8x128xi1>
    %21 = arith.xori %17, %20 : vector<8x128xi1>
    %22 = arith.andi %21, %15 : vector<8x128xi1>
    %23 = vector.broadcast %11 : i32 to vector<8x128xi32>
    %24 = arith.addi %13, %23 : vector<8x128xi32>
    %25 = arith.select %22, %24, %13 : vector<8x128xi1>, vector<8x128xi32>
    %c0_i32_9 = arith.constant 0 : i32
    %26 = vector.broadcast %c0_i32_9 : i32 to vector<8x128xi32>
    %27 = arith.cmpi eq, %25, %26 : vector<8x128xi32>
    %c7_i32 = arith.constant 7 : i32
    %28 = tpu.dynamic_rotate %8 by %c7_i32 dim 0 : vector<8x128xf32>, i32 -> vector<8x128xf32>
    %c1_i32_10 = arith.constant 1 : i32
    %29 = tpu.dynamic_rotate %8 by %c1_i32_10 dim 0 : vector<8x128xf32>, i32 -> vector<8x128xf32>
    %30 = arith.select %27, %28, %29 : vector<8x128xi1>, vector<8x128xf32>
    %31 = arith.addf %8, %30 : vector<8x128xf32>
    %cst_11 = arith.constant 5.000000e-01 : f32
    %32 = vector.broadcast %cst_11 : f32 to vector<8x128xf32>
    %33 = arith.mulf %32, %31 : vector<8x128xf32>
    %c2_i32_12 = arith.constant 2 : i32
    %34 = vector.broadcast %c2_i32_12 : i32 to vector<8x128xi32>
    %35 = arith.cmpi slt, %9, %34 : vector<8x128xi32>
    %c6_i32 = arith.constant 6 : i32
    %36 = vector.broadcast %c6_i32 : i32 to vector<8x128xi32>
    %37 = arith.cmpi sge, %9, %36 : vector<8x128xi32>
    %c2_i32_13 = arith.constant 2 : i32
    %38 = tpu.dynamic_rotate %33 by %c2_i32_13 dim 0 : vector<8x128xf32>, i32 -> vector<8x128xf32>
    %cst_14 = arith.constant 0.000000e+00 : f32
    %39 = vector.broadcast %cst_14 : f32 to vector<8x128xf32>
    %40 = arith.select %35, %39, %38 : vector<8x128xi1>, vector<8x128xf32>
    %c6_i32_15 = arith.constant 6 : i32
    %41 = tpu.dynamic_rotate %33 by %c6_i32_15 dim 0 : vector<8x128xf32>, i32 -> vector<8x128xf32>
    %cst_16 = arith.constant 0.000000e+00 : f32
    %42 = vector.broadcast %cst_16 : f32 to vector<8x128xf32>
    %43 = arith.select %37, %42, %41 : vector<8x128xi1>, vector<8x128xf32>
    %44 = arith.truncf %40 : vector<8x128xf32> to vector<8x128xbf16>
    %c0_17 = arith.constant 0 : index
    %c0_18 = arith.constant 0 : index
    %c0_19 = arith.constant 0 : index
    %45 = vector.load %arg3[%c0_17, %c0_18, %c0_19] : memref<9x128x128xbf16, #tpu.memory_space<vmem>>, vector<1x128x128xbf16>
    %46 = vector.shape_cast %45 : vector<1x128x128xbf16> to vector<128x128xbf16>
    %cst_20 = arith.constant dense<0.000000e+00> : vector<8x128xf32>
    %47 = tpu.matmul %44, %46, %cst_20 {dimension_numbers = #tpu.dot_dimension_numbers<[1], [0], [0], [1], [0, 0, 1, 1], [], []>} : vector<8x128xbf16>, vector<128x128xbf16>, vector<8x128xf32> -> vector<8x128xf32>
    %48 = arith.truncf %33 : vector<8x128xf32> to vector<8x128xbf16>
    %c1 = arith.constant 1 : index
    %c0_21 = arith.constant 0 : index
    %c0_22 = arith.constant 0 : index
    %49 = vector.load %arg3[%c1, %c0_21, %c0_22] : memref<9x128x128xbf16, #tpu.memory_space<vmem>>, vector<1x128x128xbf16>
    %50 = vector.shape_cast %49 : vector<1x128x128xbf16> to vector<128x128xbf16>
    %cst_23 = arith.constant dense<0.000000e+00> : vector<8x128xf32>
    %51 = tpu.matmul %48, %50, %cst_23 {dimension_numbers = #tpu.dot_dimension_numbers<[1], [0], [0], [1], [0, 0, 1, 1], [], []>} : vector<8x128xbf16>, vector<128x128xbf16>, vector<8x128xf32> -> vector<8x128xf32>
    %52 = arith.addf %47, %51 : vector<8x128xf32>
    %53 = arith.truncf %43 : vector<8x128xf32> to vector<8x128xbf16>
    %c2 = arith.constant 2 : index
    %c0_24 = arith.constant 0 : index
    %c0_25 = arith.constant 0 : index
    %54 = vector.load %arg3[%c2, %c0_24, %c0_25] : memref<9x128x128xbf16, #tpu.memory_space<vmem>>, vector<1x128x128xbf16>
    %55 = vector.shape_cast %54 : vector<1x128x128xbf16> to vector<128x128xbf16>
    %cst_26 = arith.constant dense<0.000000e+00> : vector<8x128xf32>
    %56 = tpu.matmul %53, %55, %cst_26 {dimension_numbers = #tpu.dot_dimension_numbers<[1], [0], [0], [1], [0, 0, 1, 1], [], []>} : vector<8x128xbf16>, vector<128x128xbf16>, vector<8x128xf32> -> vector<8x128xf32>
    %57 = arith.addf %52, %56 : vector<8x128xf32>
    %c1_27 = arith.constant 1 : index
    %c0_28 = arith.constant 0 : index
    %58 = vector.load %arg5[%c1_27, %c0_28] : memref<5x128xf32, #tpu.memory_space<vmem>>, vector<1x128xf32>
    %59 = vector.broadcast %58 : vector<1x128xf32> to vector<8x128xf32>
    %60 = arith.addf %57, %59 : vector<8x128xf32>
    %cst_29 = arith.constant 0.000000e+00 : f32
    %61 = vector.broadcast %cst_29 : f32 to vector<8x128xf32>
    %62 = arith.maximumf %60, %61 : vector<8x128xf32>
    %63 = arith.addf %62, %33 : vector<8x128xf32>
    %c2_i32_30 = arith.constant 2 : i32
    %64 = tpu.dynamic_rotate %63 by %c2_i32_30 dim 0 : vector<8x128xf32>, i32 -> vector<8x128xf32>
    %cst_31 = arith.constant 0.000000e+00 : f32
    %65 = vector.broadcast %cst_31 : f32 to vector<8x128xf32>
    %66 = arith.select %35, %65, %64 : vector<8x128xi1>, vector<8x128xf32>
    %c6_i32_32 = arith.constant 6 : i32
    %67 = tpu.dynamic_rotate %63 by %c6_i32_32 dim 0 : vector<8x128xf32>, i32 -> vector<8x128xf32>
    %cst_33 = arith.constant 0.000000e+00 : f32
    %68 = vector.broadcast %cst_33 : f32 to vector<8x128xf32>
    %69 = arith.select %37, %68, %67 : vector<8x128xi1>, vector<8x128xf32>
    %70 = arith.truncf %66 : vector<8x128xf32> to vector<8x128xbf16>
    %c3 = arith.constant 3 : index
    %c0_34 = arith.constant 0 : index
    %c0_35 = arith.constant 0 : index
    %71 = vector.load %arg3[%c3, %c0_34, %c0_35] : memref<9x128x128xbf16, #tpu.memory_space<vmem>>, vector<1x128x128xbf16>
    %72 = vector.shape_cast %71 : vector<1x128x128xbf16> to vector<128x128xbf16>
    %cst_36 = arith.constant dense<0.000000e+00> : vector<8x128xf32>
    %73 = tpu.matmul %70, %72, %cst_36 {dimension_numbers = #tpu.dot_dimension_numbers<[1], [0], [0], [1], [0, 0, 1, 1], [], []>} : vector<8x128xbf16>, vector<128x128xbf16>, vector<8x128xf32> -> vector<8x128xf32>
    %74 = arith.truncf %63 : vector<8x128xf32> to vector<8x128xbf16>
    %c4 = arith.constant 4 : index
    %c0_37 = arith.constant 0 : index
    %c0_38 = arith.constant 0 : index
    %75 = vector.load %arg3[%c4, %c0_37, %c0_38] : memref<9x128x128xbf16, #tpu.memory_space<vmem>>, vector<1x128x128xbf16>
    %76 = vector.shape_cast %75 : vector<1x128x128xbf16> to vector<128x128xbf16>
    %cst_39 = arith.constant dense<0.000000e+00> : vector<8x128xf32>
    %77 = tpu.matmul %74, %76, %cst_39 {dimension_numbers = #tpu.dot_dimension_numbers<[1], [0], [0], [1], [0, 0, 1, 1], [], []>} : vector<8x128xbf16>, vector<128x128xbf16>, vector<8x128xf32> -> vector<8x128xf32>
    %78 = arith.addf %73, %77 : vector<8x128xf32>
    %79 = arith.truncf %69 : vector<8x128xf32> to vector<8x128xbf16>
    %c5 = arith.constant 5 : index
    %c0_40 = arith.constant 0 : index
    %c0_41 = arith.constant 0 : index
    %80 = vector.load %arg3[%c5, %c0_40, %c0_41] : memref<9x128x128xbf16, #tpu.memory_space<vmem>>, vector<1x128x128xbf16>
    %81 = vector.shape_cast %80 : vector<1x128x128xbf16> to vector<128x128xbf16>
    %cst_42 = arith.constant dense<0.000000e+00> : vector<8x128xf32>
    %82 = tpu.matmul %79, %81, %cst_42 {dimension_numbers = #tpu.dot_dimension_numbers<[1], [0], [0], [1], [0, 0, 1, 1], [], []>} : vector<8x128xbf16>, vector<128x128xbf16>, vector<8x128xf32> -> vector<8x128xf32>
    %83 = arith.addf %78, %82 : vector<8x128xf32>
    %c2_43 = arith.constant 2 : index
    %c0_44 = arith.constant 0 : index
    %84 = vector.load %arg5[%c2_43, %c0_44] : memref<5x128xf32, #tpu.memory_space<vmem>>, vector<1x128xf32>
    %85 = vector.broadcast %84 : vector<1x128xf32> to vector<8x128xf32>
    %86 = arith.addf %83, %85 : vector<8x128xf32>
    %cst_45 = arith.constant 0.000000e+00 : f32
    %87 = vector.broadcast %cst_45 : f32 to vector<8x128xf32>
    %88 = arith.maximumf %86, %87 : vector<8x128xf32>
    %89 = arith.addf %88, %63 : vector<8x128xf32>
    %c2_i32_46 = arith.constant 2 : i32
    %90 = tpu.dynamic_rotate %89 by %c2_i32_46 dim 0 : vector<8x128xf32>, i32 -> vector<8x128xf32>
    %cst_47 = arith.constant 0.000000e+00 : f32
    %91 = vector.broadcast %cst_47 : f32 to vector<8x128xf32>
    %92 = arith.select %35, %91, %90 : vector<8x128xi1>, vector<8x128xf32>
    %c6_i32_48 = arith.constant 6 : i32
    %93 = tpu.dynamic_rotate %89 by %c6_i32_48 dim 0 : vector<8x128xf32>, i32 -> vector<8x128xf32>
    %cst_49 = arith.constant 0.000000e+00 : f32
    %94 = vector.broadcast %cst_49 : f32 to vector<8x128xf32>
    %95 = arith.select %37, %94, %93 : vector<8x128xi1>, vector<8x128xf32>
    %96 = arith.truncf %92 : vector<8x128xf32> to vector<8x128xbf16>
    %c6 = arith.constant 6 : index
    %c0_50 = arith.constant 0 : index
    %c0_51 = arith.constant 0 : index
    %97 = vector.load %arg3[%c6, %c0_50, %c0_51] : memref<9x128x128xbf16, #tpu.memory_space<vmem>>, vector<1x128x128xbf16>
    %98 = vector.shape_cast %97 : vector<1x128x128xbf16> to vector<128x128xbf16>
    %cst_52 = arith.constant dense<0.000000e+00> : vector<8x128xf32>
    %99 = tpu.matmul %96, %98, %cst_52 {dimension_numbers = #tpu.dot_dimension_numbers<[1], [0], [0], [1], [0, 0, 1, 1], [], []>} : vector<8x128xbf16>, vector<128x128xbf16>, vector<8x128xf32> -> vector<8x128xf32>
    %100 = arith.truncf %89 : vector<8x128xf32> to vector<8x128xbf16>
    %c7 = arith.constant 7 : index
    %c0_53 = arith.constant 0 : index
    %c0_54 = arith.constant 0 : index
    %101 = vector.load %arg3[%c7, %c0_53, %c0_54] : memref<9x128x128xbf16, #tpu.memory_space<vmem>>, vector<1x128x128xbf16>
    %102 = vector.shape_cast %101 : vector<1x128x128xbf16> to vector<128x128xbf16>
    %cst_55 = arith.constant dense<0.000000e+00> : vector<8x128xf32>
    %103 = tpu.matmul %100, %102, %cst_55 {dimension_numbers = #tpu.dot_dimension_numbers<[1], [0], [0], [1], [0, 0, 1, 1], [], []>} : vector<8x128xbf16>, vector<128x128xbf16>, vector<8x128xf32> -> vector<8x128xf32>
    %104 = arith.addf %99, %103 : vector<8x128xf32>
    %105 = arith.truncf %95 : vector<8x128xf32> to vector<8x128xbf16>
    %c8 = arith.constant 8 : index
    %c0_56 = arith.constant 0 : index
    %c0_57 = arith.constant 0 : index
    %106 = vector.load %arg3[%c8, %c0_56, %c0_57] : memref<9x128x128xbf16, #tpu.memory_space<vmem>>, vector<1x128x128xbf16>
    %107 = vector.shape_cast %106 : vector<1x128x128xbf16> to vector<128x128xbf16>
    %cst_58 = arith.constant dense<0.000000e+00> : vector<8x128xf32>
    %108 = tpu.matmul %105, %107, %cst_58 {dimension_numbers = #tpu.dot_dimension_numbers<[1], [0], [0], [1], [0, 0, 1, 1], [], []>} : vector<8x128xbf16>, vector<128x128xbf16>, vector<8x128xf32> -> vector<8x128xf32>
    %109 = arith.addf %104, %108 : vector<8x128xf32>
    %c3_59 = arith.constant 3 : index
    %c0_60 = arith.constant 0 : index
    %110 = vector.load %arg5[%c3_59, %c0_60] : memref<5x128xf32, #tpu.memory_space<vmem>>, vector<1x128xf32>
    %111 = vector.broadcast %110 : vector<1x128xf32> to vector<8x128xf32>
    %112 = arith.addf %109, %111 : vector<8x128xf32>
    %cst_61 = arith.constant 0.000000e+00 : f32
    %113 = vector.broadcast %cst_61 : f32 to vector<8x128xf32>
    %114 = arith.maximumf %112, %113 : vector<8x128xf32>
    %115 = arith.addf %114, %89 : vector<8x128xf32>
    %116 = arith.truncf %115 : vector<8x128xf32> to vector<8x128xbf16>
    %c0_62 = arith.constant 0 : index
    %c0_63 = arith.constant 0 : index
    %117 = vector.load %arg4[%c0_62, %c0_63] : memref<128x128xbf16, #tpu.memory_space<vmem>>, vector<128x128xbf16>
    %cst_64 = arith.constant dense<0.000000e+00> : vector<8x128xf32>
    %118 = tpu.matmul %116, %117, %cst_64 {dimension_numbers = #tpu.dot_dimension_numbers<[1], [0], [0], [1], [0, 0, 1, 1], [], []>} : vector<8x128xbf16>, vector<128x128xbf16>, vector<8x128xf32> -> vector<8x128xf32>
    %c4_65 = arith.constant 4 : index
    %c0_66 = arith.constant 0 : index
    %119 = vector.load %arg5[%c4_65, %c0_66] : memref<5x128xf32, #tpu.memory_space<vmem>>, vector<1x128xf32>
    %120 = vector.broadcast %119 : vector<1x128xf32> to vector<8x128xf32>
    %121 = arith.addf %118, %120 : vector<8x128xf32>
    %c0_67 = arith.constant 0 : index
    %c0_68 = arith.constant 0 : index
    %122 = vector.load %arg6[%c0_67, %c0_68] : memref<8x128xf32, #tpu.memory_space<vmem>>, vector<8x128xf32>
    tpu.vector_store %arg6[%c0_67, %c0_68], %121 {strides = array<i32>} : memref<8x128xf32, #tpu.memory_space<vmem>>, vector<8x128xf32>,
    return
  }
  func.func @transform_0(%arg0: i32) -> (i32, i32) {
    %c0_i32 = arith.constant 0 : i32
    %c0_i32_0 = arith.constant 0 : i32
    return %arg0, %c0_i32 : i32, i32
  }
  func.func @transform_1(%arg0: i32) -> (i32, i32) {
    %c0_i32 = arith.constant 0 : i32
    %c0_i32_0 = arith.constant 0 : i32
    %c0_i32_1 = arith.constant 0 : i32
    return %c0_i32, %c0_i32_0 : i32, i32
  }
  func.func @transform_2(%arg0: i32) -> (i32, i32, i32) {
    %c0_i32 = arith.constant 0 : i32
    %c0_i32_0 = arith.constant 0 : i32
    %c0_i32_1 = arith.constant 0 : i32
    %c0_i32_2 = arith.constant 0 : i32
    return %c0_i32, %c0_i32_0, %c0_i32_1 : i32, i32, i32
  }
  func.func @transform_3(%arg0: i32) -> (i32, i32) {
    %c0_i32 = arith.constant 0 : i32
    %c0_i32_0 = arith.constant 0 : i32
    %c0_i32_1 = arith.constant 0 : i32
    return %c0_i32, %c0_i32_0 : i32, i32
  }
  func.func @transform_4(%arg0: i32) -> (i32, i32) {
    %c0_i32 = arith.constant 0 : i32
    %c0_i32_0 = arith.constant 0 : i32
    %c0_i32_1 = arith.constant 0 : i32
    return %c0_i32, %c0_i32_0 : i32, i32
  }
  func.func @transform_5(%arg0: i32) -> (i32, i32) {
    %c0_i32 = arith.constant 0 : i32
    %c0_i32_0 = arith.constant 0 : i32
    return %arg0, %c0_i32 : i32, i32
  }
}

</mosaic_0001>

<llo_original>
// kernel: model_forward.1
$region0: #{model_forward.1}
  #allocation0 [shape = 'u32[]', space=smem, size = 0x4, offset = 0x4, fixed_abs, tag = 'smem constant byte address 0x4 - core index']
  #allocation1 [shape = 'u32[144,128]{1,0:T(1,128)}', space=vmem, size = 0x12000, scoped, tag = 'internal scratch']
  %s0 = inlined_call_operand.vmem [shape: f32[16,768], index: 0, kind: input, shape index: {}]
  %s1 = inlined_call_operand.hbm [shape: bf16[768,128], index: 1, kind: input, shape index: {}]
  %s2 = inlined_call_operand.vmem [shape: bf16[9,128,128], index: 2, kind: input, shape index: {}]
  %s3 = inlined_call_operand.vmem [shape: bf16[128,128], index: 3, kind: input, shape index: {}]
  %s4 = inlined_call_operand.vmem [shape: f32[5,128], index: 4, kind: input, shape index: {}]
  %s5 = inlined_call_operand.vmem [shape: f32[16,128], index: 5, kind: output, shape index: {}]
  %s6 = sld [smem:[#allocation0]]
  $region57: #{model_forward.1} parent=0
    _
  %s8 = ssub.s32 1, %s6
  %s9 = scalar_select 0, %s8, %s6
  $region1: #{model_forward.1} parent=0
    #allocation2 [shape = 'u8[196608]{0}', space=vmem, size = 0x30000, scoped, tag = 'input window, operand 1, single buffered']
    #allocation3 [shape = 's32[2]{0}', space=sflag, size = 0x8, scoped, tag = 'scoped memory for model_forward.1']
    %10 = vsyncpa [#allocation3], 0
    loop: start=0, step=1, limit=4
    $region2: #{model_forward.1} parent=1 // loop_pre_header
      _
    $region3: #{model_forward.1} parent=1 // loop_header
      %s12 = sphi 0, %s16
      %p13 = scmp.ge.s32.totalorder %s12, 4
      %s22 = sphi 0, %s24
      %s25 = sphi 0, %s22
      %s26 = sphi 0, %s25
      %s42 = sphi 0, %s26
      %s46 = sphi 0, %s46
      %s48 = sphi 0, %s46
      %s49 = sphi 0, %s48
      %s63 = sphi 0, %s49
      %s67 = sphi 0, %s67
      %s69 = sphi 0, %s67
      %s70 = sphi 0, %s69
      %s84 = sphi 0, %s70
      %s88 = sphi 0, %s88
      %s90 = sphi 0, %s88
      %s91 = sphi 0, %s90
      %s105 = sphi 0, %s91
      %s109 = sphi 0, %s109
      %s111 = sphi 0, %s109
      %s112 = sphi 0, %s111
      %s126 = sphi 0, %s112
      %s132 = sphi 0, %s134
      %s135 = sphi 0, %s132
      %s136 = sphi 0, %s135
      %s152 = sphi 0, %s136
    $region4: #{model_forward.1} parent=1 // loop_header_branch
      %15 = sbr.rel (%p13) target = $region8
    $region5: #{model_forward.1} parent=1 // loop_body
      %s17 = ssub.s32 %s12, 1
      %s18 = ssub.s32 %s12, 2
      %s19 = sadd.s32 %s12, 1
      %s20 = ssub.s32 %s12, %s19
      %p21 = scmp.eq.s32.totalorder %s20, 0
      %s23 = sadd.s32 %s22, 1
      %s24 = scalar_select %p21, %s22, %s23
      %p27 = pneg %p21
      %p28 = scmp.eq.s32.totalorder %s12, 1
      %p29 = por %p27, %p28
      %p30 = scmp.ne.s32.totalorder %s22, %s25
      %p31 = scmp.eq.s32.totalorder %s12, 0
      %p32 = por %p30, %p31
      %p33 = scmp.ne.s32.totalorder %s22, %s25
      %p34 = scmp.eq.s32.totalorder %s17, 1
      %p35 = por %p33, %p34
      %p36 = scmp.ne.s32.totalorder %s25, %s26
      %p37 = scmp.eq.s32.totalorder %s17, 0
      %p38 = por %p36, %p37
      %p39 = scmp.ne.s32.totalorder %s25, %s26
      %p40 = scmp.eq.s32.totalorder %s18, 1
      %p41 = por %p39, %p40
      %p43 = scmp.ne.s32.totalorder %s26, %s42
      %p44 = scmp.eq.s32.totalorder %s18, 0
      %p45 = por %p43, %p44
      %s47 = sadd.s32 %s46, 1
      %p50 = scmp.eq.s32.totalorder %s12, 1
      %p51 = scmp.ne.s32.totalorder %s46, %s48
      %p52 = scmp.eq.s32.totalorder %s12, 0
      %p53 = por %p51, %p52
      %p54 = scmp.ne.s32.totalorder %s46, %s48
      %p55 = scmp.eq.s32.totalorder %s17, 1
      %p56 = por %p54, %p55
      %p57 = scmp.ne.s32.totalorder %s48, %s49
      %p58 = scmp.eq.s32.totalorder %s17, 0
      %p59 = por %p57, %p58
      %p60 = scmp.ne.s32.totalorder %s48, %s49
      %p61 = scmp.eq.s32.totalorder %s18, 1
      %p62 = por %p60, %p61
      %p64 = scmp.ne.s32.totalorder %s49, %s63
      %p65 = scmp.eq.s32.totalorder %s18, 0
      %p66 = por %p64, %p65
      %s68 = sadd.s32 %s67, 1
      %p71 = scmp.eq.s32.totalorder %s12, 1
      %p72 = scmp.ne.s32.totalorder %s67, %s69
      %p73 = scmp.eq.s32.totalorder %s12, 0
      %p74 = por %p72, %p73
      %p75 = scmp.ne.s32.totalorder %s67, %s69
      %p76 = scmp.eq.s32.totalorder %s17, 1
      %p77 = por %p75, %p76
      %p78 = scmp.ne.s32.totalorder %s69, %s70
      %p79 = scmp.eq.s32.totalorder %s17, 0
      %p80 = por %p78, %p79
      %p81 = scmp.ne.s32.totalorder %s69, %s70
      %p82 = scmp.eq.s32.totalorder %s18, 1
      %p83 = por %p81, %p82
      %p85 = scmp.ne.s32.totalorder %s70, %s84
      %p86 = scmp.eq.s32.totalorder %s18, 0
      %p87 = por %p85, %p86
      %s89 = sadd.s32 %s88, 1
      %p92 = scmp.eq.s32.totalorder %s12, 1
      %p93 = scmp.ne.s32.totalorder %s88, %s90
      %p94 = scmp.eq.s32.totalorder %s12, 0
      %p95 = por %p93, %p94
      %p96 = scmp.ne.s32.totalorder %s88, %s90
      %p97 = scmp.eq.s32.totalorder %s17, 1
      %p98 = por %p96, %p97
      %p99 = scmp.ne.s32.totalorder %s90, %s91
      %p100 = scmp.eq.s32.totalorder %s17, 0
      %p101 = por %p99, %p100
      %p102 = scmp.ne.s32.totalorder %s90, %s91
      %p103 = scmp.eq.s32.totalorder %s18, 1
      %p104 = por %p102, %p103
      %p106 = scmp.ne.s32.totalorder %s91, %s105
      %p107 = scmp.eq.s32.totalorder %s18, 0
      %p108 = por %p106, %p107
      %s110 = sadd.s32 %s109, 1
      %p113 = scmp.eq.s32.totalorder %s12, 1
      %p114 = scmp.ne.s32.totalorder %s109, %s111
      %p115 = scmp.eq.s32.totalorder %s12, 0
      %p116 = por %p114, %p115
      %p117 = scmp.ne.s32.totalorder %s109, %s111
      %p118 = scmp.eq.s32.totalorder %s17, 1
      %p119 = por %p117, %p118
      %p120 = scmp.ne.s32.totalorder %s111, %s112
      %p121 = scmp.eq.s32.totalorder %s17, 0
      %p122 = por %p120, %p121
      %p123 = scmp.ne.s32.totalorder %s111, %s112
      %p124 = scmp.eq.s32.totalorder %s18, 1
      %p125 = por %p123, %p124
      %p127 = scmp.ne.s32.totalorder %s112, %s126
      %p128 = scmp.eq.s32.totalorder %s18, 0
      %p129 = por %p127, %p128
      %s130 = ssub.s32 %s12, %s19
      %p131 = scmp.eq.s32.totalorder %s130, 0
      %s133 = sadd.s32 %s132, 1
      %s134 = scalar_select %p131, %s132, %s133
      %p137 = pneg %p131
      %p138 = scmp.eq.s32.totalorder %s12, 1
      %p139 = por %p137, %p138
      %p140 = scmp.ne.s32.totalorder %s132, %s135
      %p141 = scmp.eq.s32.totalorder %s12, 0
      %p142 = por %p140, %p141
      %p143 = scmp.ne.s32.totalorder %s132, %s135
      %p144 = scmp.eq.s32.totalorder %s17, 1
      %p145 = por %p143, %p144
      %p146 = scmp.ne.s32.totalorder %s135, %s136
      %p147 = scmp.eq.s32.totalorder %s17, 0
      %p148 = por %p146, %p147
      %p149 = scmp.ne.s32.totalorder %s135, %s136
      %p150 = scmp.eq.s32.totalorder %s18, 1
      %p151 = por %p149, %p150
      %p153 = scmp.ne.s32.totalorder %s136, %s152
      %p154 = scmp.eq.s32.totalorder %s18, 0
      %p155 = por %p153, %p154
      %p156 = scmp.le.s32.totalorder 1, %s12
      %p157 = scmp.lt.s32.totalorder %s12, 3
      %p158 = pnand %p156, %p157
      %p159 = pneg %p158
      // Predicated region
      $region9: #{model_forward.1} parent=5 // pred_check
        _
      $region10: #{model_forward.1} parent=5 // pred_check_branch
        %161 = sbr.rel (%p158) target = $region12
      $region11: #{model_forward.1} parent=5 // pred_region
        %s162 = ssub.s32 %s12, 1
        // Predicated region
        $region13: #{model_forward.1} parent=11 // pred_check
          %p163 = pneg %p59
        $region14: #{model_forward.1} parent=11 // pred_check_branch
          %165 = sbr.rel (%p163) target = $region16
        $region15: #{model_forward.1} parent=11 // pred_region
          %s167 = ssub.s32 6144, 6144
          %168 = vsyncadd [#allocation3], %s167
          %s169 = sshll.u32 [#allocation2], 4
          %s170 = int_to_ptr.vmem [resolvable:$true] %s169
          %175 = dma.hbm_to_vmem [thread:$0]  %s1, 6144, %s170, [#allocation3], 64, 64, 4
        $region16: #{model_forward.1} parent=11 // pred_fallthru
          _
        // Predicated region
        $region17: #{model_forward.1} parent=11 // pred_check
          %p176 = pneg %p80
        $region18: #{model_forward.1} parent=11 // pred_check_branch
          %178 = sbr.rel (%p176) target = $region20
        $region19: #{model_forward.1} parent=11 // pred_region
          _
        $region20: #{model_forward.1} parent=11 // pred_fallthru
          _
        // Predicated region
        $region21: #{model_forward.1} parent=11 // pred_check
          %p179 = pneg %p101
        $region22: #{model_forward.1} parent=11 // pred_check_branch
          %181 = sbr.rel (%p179) target = $region24
        $region23: #{model_forward.1} parent=11 // pred_region
          _
        $region24: #{model_forward.1} parent=11 // pred_fallthru
          _
        // Predicated region
        $region25: #{model_forward.1} parent=11 // pred_check
          %p182 = pneg %p122
        $region26: #{model_forward.1} parent=11 // pred_check_branch
          %184 = sbr.rel (%p182) target = $region28
        $region27: #{model_forward.1} parent=11 // pred_region
          _
        $region28: #{model_forward.1} parent=11 // pred_fallthru
          _
      $region12: #{model_forward.1} parent=5 // pred_fallthru
        _
      %p185 = scmp.lt.s32.totalorder %s12, 2
      // Predicated region
      $region29: #{model_forward.1} parent=5 // pred_check
        %p186 = pneg %p185
      $region30: #{model_forward.1} parent=5 // pred_check_branch
        %188 = sbr.rel (%p186) target = $region32
      $region31: #{model_forward.1} parent=5 // pred_region
        // Predicated region
        $region33: #{model_forward.1} parent=31 // pred_check
          %p189 = pneg %p32
        $region34: #{model_forward.1} parent=31 // pred_check_branch
          %191 = sbr.rel (%p189) target = $region36
        $region35: #{model_forward.1} parent=31 // pred_region
          %p192 = scmp.lt.s32.totalorder %s12, 1
          %s193 = scalar_select %p192, %s12, 1
          %s194 = smul.addr %s193, 6
          %s195 = smul.addr %s194, 8
          %s196 = scalar_lea.vmem %s0, %s195
        $region36: #{model_forward.1} parent=31 // pred_fallthru
          _
      $region32: #{model_forward.1} parent=5 // pred_fallthru
        _
      %p197 = scmp.le.s32.totalorder 1, %s12
      %p198 = scmp.lt.s32.totalorder %s12, 3
      %p199 = pnand %p197, %p198
      %p200 = pneg %p199
      // Predicated region
      $region37: #{model_forward.1} parent=5 // pred_check
        _
      $region38: #{model_forward.1} parent=5 // pred_check_branch
        %202 = sbr.rel (%p199) target = $region40
      $region39: #{model_forward.1} parent=5 // pred_region
        %s203 = ssub.s32 %s12, 1
        // Predicated region
        $region41: #{model_forward.1} parent=39 // pred_check
          %p204 = pneg %p59
        $region42: #{model_forward.1} parent=39 // pred_check_branch
          %206 = sbr.rel (%p204) target = $region44
        $region43: #{model_forward.1} parent=39 // pred_region
          %207 = dma.done [#allocation3], 6144
        $region44: #{model_forward.1} parent=39 // pred_fallthru
          _
        %p208 = scmp.lt.s32.totalorder %s17, 1
        %s209 = scalar_select %p208, %s17, 1
        %s210 = smul.addr %s209, 6
        %s211 = smul.addr %s210, 8
        %s212 = scalar_lea.vmem %s0, %s211
        %p213 = pneg %p38
        %p214 = pneg %p35
        %p215 = pneg %p59
        %p216 = pneg %p56
        %p217 = pneg %p80
        %p218 = pneg %p77
        %p219 = pneg %p101
        %p220 = pneg %p98
        %p221 = pneg %p122
        %p222 = pneg %p119
        %p223 = pneg %p148
        %p224 = pneg %p145
        %p225 = scmp.lt.s32.totalorder %s17, 1
        %s226 = scalar_select %p225, %s17, 1
        %s227 = smul.addr %s226, 8
        %s228 = scalar_lea.vmem %s5, %s227
        %p229 = scmp.lt.s32.totalorder %s17, 1
        %s230 = scalar_select %p229, %s17, 1
        %s231 = smul.addr %s230, 6
        %s232 = smul.addr %s231, 8
        %s233 = scalar_lea.vmem %s0, %s232
        %p234 = scmp.lt.s32.totalorder %s17, 1
        %s235 = scalar_select %p234, %s17, 1
        %s236 = smul.addr %s235, 8
        %s237 = scalar_lea.vmem %s5, %s236
        %v239 = vld [vmem:[%s233] sm:$0xff]
        %v240 = vld [vmem:[%s233 + $0x8] sm:$0xff]
        %v241 = vld [vmem:[%s233 + $0x10] sm:$0xff]
        %v242 = vld [vmem:[%s233 + $0x18] sm:$0xff]
        %v243 = vld [vmem:[%s233 + $0x20] sm:$0xff]
        %v244 = vld [vmem:[%s233 + $0x28] sm:$0xff]
        %v245 = vpack.c.bf16 %v239, %v239
        %v246 = vpack.c.bf16 %v240, %v240
        %v247 = vpack.c.bf16 %v241, %v241
        %v248 = vpack.c.bf16 %v242, %v242
        %v249 = vpack.c.bf16 %v243, %v243
        %v250 = vpack.c.bf16 %v244, %v244
        %v251 = vld [vmem:[#allocation2] sm:$0xf]
        %v252 = vld [vmem:[#allocation2 + $0x4] sm:$0xf]
        %v253 = vld [vmem:[#allocation2 + $0x8] sm:$0xf]
        %v254 = vld [vmem:[#allocation2 + $0xc] sm:$0xf]
        %v255 = vld [vmem:[#allocation2 + $0x10] sm:$0xf]
        %v256 = vld [vmem:[#allocation2 + $0x14] sm:$0xf]
        %v257 = vld [vmem:[#allocation2 + $0x18] sm:$0xf]
        %v258 = vld [vmem:[#allocation2 + $0x1c] sm:$0xf]
        %v259 = vld [vmem:[#allocation2 + $0x20] sm:$0xf]
        %v260 = vld [vmem:[#allocation2 + $0x24] sm:$0xf]
        %v261 = vld [vmem:[#allocation2 + $0x28] sm:$0xf]
        %v262 = vld [vmem:[#allocation2 + $0x2c] sm:$0xf]
        %v263 = vld [vmem:[#allocation2 + $0x30] sm:$0xf]
        %v264 = vld [vmem:[#allocation2 + $0x34] sm:$0xf]
        %v265 = vld [vmem:[#allocation2 + $0x38] sm:$0xf]
        %v266 = vld [vmem:[#allocation2 + $0x3c] sm:$0xf]
        %v267 = vld [vmem:[#allocation2 + $0x40] sm:$0xf]
        %v268 = vld [vmem:[#allocation2 + $0x44] sm:$0xf]
        %v269 = vld [vmem:[#allocation2 + $0x48] sm:$0xf]
        %v270 = vld [vmem:[#allocation2 + $0x4c] sm:$0xf]
        %v271 = vld [vmem:[#allocation2 + $0x50] sm:$0xf]
        %v272 = vld [vmem:[#allocation2 + $0x54] sm:$0xf]
        %v273 = vld [vmem:[#allocation2 + $0x58] sm:$0xf]
        %v274 = vld [vmem:[#allocation2 + $0x5c] sm:$0xf]
        %v275 = vld [vmem:[#allocation2 + $0x60] sm:$0xf]
        %v276 = vld [vmem:[#allocation2 + $0x64] sm:$0xf]
        %v277 = vld [vmem:[#allocation2 + $0x68] sm:$0xf]
        %v278 = vld [vmem:[#allocation2 + $0x6c] sm:$0xf]
        %v279 = vld [vmem:[#allocation2 + $0x70] sm:$0xf]
        %v280 = vld [vmem:[#allocation2 + $0x74] sm:$0xf]
        %v281 = vld [vmem:[#allocation2 + $0x78] sm:$0xf]
        %v282 = vld [vmem:[#allocation2 + $0x7c] sm:$0xf]
        %v283 = vld [vmem:[#allocation2 + $0x80] sm:$0xf]
        %v284 = vld [vmem:[#allocation2 + $0x84] sm:$0xf]
        %v285 = vld [vmem:[#allocation2 + $0x88] sm:$0xf]
        %v286 = vld [vmem:[#allocation2 + $0x8c] sm:$0xf]
        %v287 = vld [vmem:[#allocation2 + $0x90] sm:$0xf]
        %v288 = vld [vmem:[#allocation2 + $0x94] sm:$0xf]
        %v289 = vld [vmem:[#allocation2 + $0x98] sm:$0xf]
        %v290 = vld [vmem:[#allocation2 + $0x9c] sm:$0xf]
        %v291 = vld [vmem:[#allocation2 + $0xa0] sm:$0xf]
        %v292 = vld [vmem:[#allocation2 + $0xa4] sm:$0xf]
        %v293 = vld [vmem:[#allocation2 + $0xa8] sm:$0xf]
        %v294 = vld [vmem:[#allocation2 + $0xac] sm:$0xf]
        %v295 = vld [vmem:[#allocation2 + $0xb0] sm:$0xf]
        %v296 = vld [vmem:[#allocation2 + $0xb4] sm:$0xf]
        %v297 = vld [vmem:[#allocation2 + $0xb8] sm:$0xf]
        %v298 = vld [vmem:[#allocation2 + $0xbc] sm:$0xf]
        %v299 = vld [vmem:[#allocation2 + $0xc0] sm:$0xf]
        %v300 = vld [vmem:[#allocation2 + $0xc4] sm:$0xf]
        %v301 = vld [vmem:[#allocation2 + $0xc8] sm:$0xf]
        %v302 = vld [vmem:[#allocation2 + $0xcc] sm:$0xf]
        %v303 = vld [vmem:[#allocation2 + $0xd0] sm:$0xf]
        %v304 = vld [vmem:[#allocation2 + $0xd4] sm:$0xf]
        %v305 = vld [vmem:[#allocation2 + $0xd8] sm:$0xf]
        %v306 = vld [vmem:[#allocation2 + $0xdc] sm:$0xf]
        %v307 = vld [vmem:[#allocation2 + $0xe0] sm:$0xf]
        %v308 = vld [vmem:[#allocation2 + $0xe4] sm:$0xf]
        %v309 = vld [vmem:[#allocation2 + $0xe8] sm:$0xf]
        %v310 = vld [vmem:[#allocation2 + $0xec] sm:$0xf]
        %v311 = vld [vmem:[#allocation2 + $0xf0] sm:$0xf]
        %v312 = vld [vmem:[#allocation2 + $0xf4] sm:$0xf]
        %v313 = vld [vmem:[#allocation2 + $0xf8] sm:$0xf]
        %v314 = vld [vmem:[#allocation2 + $0xfc] sm:$0xf]
        %v315 = vld [vmem:[#allocation2 + $0x100] sm:$0xf]
        %v316 = vld [vmem:[#allocation2 + $0x104] sm:$0xf]
        %v317 = vld [vmem:[#allocation2 + $0x108] sm:$0xf]
        %v318 = vld [vmem:[#allocation2 + $0x10c] sm:$0xf]
        %v319 = vld [vmem:[#allocation2 + $0x110] sm:$0xf]
        %v320 = vld [vmem:[#allocation2 + $0x114] sm:$0xf]
        %v321 = vld [vmem:[#allocation2 + $0x118] sm:$0xf]
        %v322 = vld [vmem:[#allocation2 + $0x11c] sm:$0xf]
        %v323 = vld [vmem:[#allocation2 + $0x120] sm:$0xf]
        %v324 = vld [vmem:[#allocation2 + $0x124] sm:$0xf]
        %v325 = vld [vmem:[#allocation2 + $0x128] sm:$0xf]
        %v326 = vld [vmem:[#allocation2 + $0x12c] sm:$0xf]
        %v327 = vld [vmem:[#allocation2 + $0x130] sm:$0xf]
        %v328 = vld [vmem:[#allocation2 + $0x134] sm:$0xf]
        %v329 = vld [vmem:[#allocation2 + $0x138] sm:$0xf]
        %v330 = vld [vmem:[#allocation2 + $0x13c] sm:$0xf]
        %v331 = vld [vmem:[#allocation2 + $0x140] sm:$0xf]
        %v332 = vld [vmem:[#allocation2 + $0x144] sm:$0xf]
        %v333 = vld [vmem:[#allocation2 + $0x148] sm:$0xf]
        %v334 = vld [vmem:[#allocation2 + $0x14c] sm:$0xf]
        %v335 = vld [vmem:[#allocation2 + $0x150] sm:$0xf]
        %v336 = vld [vmem:[#allocation2 + $0x154] sm:$0xf]
        %v337 = vld [vmem:[#allocation2 + $0x158] sm:$0xf]
        %v338 = vld [vmem:[#allocation2 + $0x15c] sm:$0xf]
        %v339 = vld [vmem:[#allocation2 + $0x160] sm:$0xf]
        %v340 = vld [vmem:[#allocation2 + $0x164] sm:$0xf]
        %v341 = vld [vmem:[#allocation2 + $0x168] sm:$0xf]
        %v342 = vld [vmem:[#allocation2 + $0x16c] sm:$0xf]
        %v343 = vld [vmem:[#allocation2 + $0x170] sm:$0xf]
        %v344 = vld [vmem:[#allocation2 + $0x174] sm:$0xf]
        %v345 = vld [vmem:[#allocation2 + $0x178] sm:$0xf]
        %v346 = vld [vmem:[#allocation2 + $0x17c] sm:$0xf]
        %v347 = vld [vmem:[%s4] sm:$0x1]
        %v348 = vlaneseq
        %v349 = vshrl.u32 %v348, 7
        %v350 = vsub.s32 0, %v349
        %v351 = vrot.slane %v347, %v350
        %v448 = vunpack.c.l.b16 %v251
        %v449 = vunpack.c.l.b16 %v252
        %v450 = vunpack.c.l.b16 %v253
        %v451 = vunpack.c.l.b16 %v254
        %v452 = vunpack.c.l.b16 %v255
        %v453 = vunpack.c.l.b16 %v256
        %v454 = vunpack.c.l.b16 %v257
        %v455 = vunpack.c.l.b16 %v258
        %v456 = vunpack.c.l.b16 %v259
        %v457 = vunpack.c.l.b16 %v260
        %v458 = vunpack.c.l.b16 %v261
        %v459 = vunpack.c.l.b16 %v262
        %v460 = vunpack.c.l.b16 %v263
        %v461 = vunpack.c.l.b16 %v264
        %v462 = vunpack.c.l.b16 %v265
        %v463 = vunpack.c.l.b16 %v266
        %v464 = vunpack.c.l.b16 %v267
        %v465 = vunpack.c.l.b16 %v268
        %v466 = vunpack.c.l.b16 %v269
        %v467 = vunpack.c.l.b16 %v270
        %v468 = vunpack.c.l.b16 %v271
        %v469 = vunpack.c.l.b16 %v272
        %v470 = vunpack.c.l.b16 %v273
        %v471 = vunpack.c.l.b16 %v274
        %v472 = vunpack.c.l.b16 %v275
        %v473 = vunpack.c.l.b16 %v276
        %v474 = vunpack.c.l.b16 %v277
        %v475 = vunpack.c.l.b16 %v278
        %v476 = vunpack.c.l.b16 %v279
        %v477 = vunpack.c.l.b16 %v280
        %v478 = vunpack.c.l.b16 %v281
        %v479 = vunpack.c.l.b16 %v282
        %v480 = vunpack.c.l.b16 %v283
        %v481 = vunpack.c.l.b16 %v284
        %v482 = vunpack.c.l.b16 %v285
        %v483 = vunpack.c.l.b16 %v286
        %v484 = vunpack.c.l.b16 %v287
        %v485 = vunpack.c.l.b16 %v288
        %v486 = vunpack.c.l.b16 %v289
        %v487 = vunpack.c.l.b16 %v290
        %v488 = vunpack.c.l.b16 %v291
        %v489 = vunpack.c.l.b16 %v292
        %v490 = vunpack.c.l.b16 %v293
        %v491 = vunpack.c.l.b16 %v294
        %v492 = vunpack.c.l.b16 %v295
        %v493 = vunpack.c.l.b16 %v296
        %v494 = vunpack.c.l.b16 %v297
        %v495 = vunpack.c.l.b16 %v298
        %v496 = vunpack.c.l.b16 %v299
        %v497 = vunpack.c.l.b16 %v300
        %v498 = vunpack.c.l.b16 %v301
        %v499 = vunpack.c.l.b16 %v302
        %v500 = vunpack.c.l.b16 %v303
        %v501 = vunpack.c.l.b16 %v304
        %v502 = vunpack.c.l.b16 %v305
        %v503 = vunpack.c.l.b16 %v306
        %v504 = vunpack.c.l.b16 %v307
        %v505 = vunpack.c.l.b16 %v308
        %v506 = vunpack.c.l.b16 %v309
        %v507 = vunpack.c.l.b16 %v310
        %v508 = vunpack.c.l.b16 %v311
        %v509 = vunpack.c.l.b16 %v312
        %v510 = vunpack.c.l.b16 %v313
        %v511 = vunpack.c.l.b16 %v314
        %v512 = vunpack.c.l.b16 %v315
        %v513 = vunpack.c.l.b16 %v316
        %v514 = vunpack.c.l.b16 %v317
        %v515 = vunpack.c.l.b16 %v318
        %v516 = vunpack.c.l.b16 %v319
        %v517 = vunpack.c.l.b16 %v320
        %v518 = vunpack.c.l.b16 %v321
        %v519 = vunpack.c.l.b16 %v322
        %v520 = vunpack.c.l.b16 %v323
        %v521 = vunpack.c.l.b16 %v324
        %v522 = vunpack.c.l.b16 %v325
        %v523 = vunpack.c.l.b16 %v326
        %v524 = vunpack.c.l.b16 %v327
        %v525 = vunpack.c.l.b16 %v328
        %v526 = vunpack.c.l.b16 %v329
        %v527 = vunpack.c.l.b16 %v330
        %v528 = vunpack.c.l.b16 %v331
        %v529 = vunpack.c.l.b16 %v332
        %v530 = vunpack.c.l.b16 %v333
        %v531 = vunpack.c.l.b16 %v334
        %v532 = vunpack.c.l.b16 %v335
        %v533 = vunpack.c.l.b16 %v336
        %v534 = vunpack.c.l.b16 %v337
        %v535 = vunpack.c.l.b16 %v338
        %v536 = vunpack.c.l.b16 %v339
        %v537 = vunpack.c.l.b16 %v340
        %v538 = vunpack.c.l.b16 %v341
        %v539 = vunpack.c.l.b16 %v342
        %v540 = vunpack.c.l.b16 %v343
        %v541 = vunpack.c.l.b16 %v344
        %v542 = vunpack.c.l.b16 %v345
        %v543 = vunpack.c.l.b16 %v346
        %v544 = vpack.c.b16 %v449, %v448
        %v545 = vpack.c.b16 %v451, %v450
        %v546 = vpack.c.b16 %v453, %v452
        %v547 = vpack.c.b16 %v455, %v454
        %v548 = vpack.c.b16 %v457, %v456
        %v549 = vpack.c.b16 %v459, %v458
        %v550 = vpack.c.b16 %v461, %v460
        %v551 = vpack.c.b16 %v463, %v462
        %v552 = vpack.c.b16 %v465, %v464
        %v553 = vpack.c.b16 %v467, %v466
        %v554 = vpack.c.b16 %v469, %v468
        %v555 = vpack.c.b16 %v471, %v470
        %v556 = vpack.c.b16 %v473, %v472
        %v557 = vpack.c.b16 %v475, %v474
        %v558 = vpack.c.b16 %v477, %v476
        %v559 = vpack.c.b16 %v479, %v478
        %v560 = vpack.c.b16 %v481, %v480
        %v561 = vpack.c.b16 %v483, %v482
        %v562 = vpack.c.b16 %v485, %v484
        %v563 = vpack.c.b16 %v487, %v486
        %v564 = vpack.c.b16 %v489, %v488
        %v565 = vpack.c.b16 %v491, %v490
        %v566 = vpack.c.b16 %v493, %v492
        %v567 = vpack.c.b16 %v495, %v494
        %v568 = vpack.c.b16 %v497, %v496
        %v569 = vpack.c.b16 %v499, %v498
        %v570 = vpack.c.b16 %v501, %v500
        %v571 = vpack.c.b16 %v503, %v502
        %v572 = vpack.c.b16 %v505, %v504
        %v573 = vpack.c.b16 %v507, %v506
        %v574 = vpack.c.b16 %v509, %v508
        %v575 = vpack.c.b16 %v511, %v510
        %v576 = vpack.c.b16 %v513, %v512
        %v577 = vpack.c.b16 %v515, %v514
        %v578 = vpack.c.b16 %v517, %v516
        %v579 = vpack.c.b16 %v519, %v518
        %v580 = vpack.c.b16 %v521, %v520
        %v581 = vpack.c.b16 %v523, %v522
        %v582 = vpack.c.b16 %v525, %v524
        %v583 = vpack.c.b16 %v527, %v526
        %v584 = vpack.c.b16 %v529, %v528
        %v585 = vpack.c.b16 %v531, %v530
        %v586 = vpack.c.b16 %v533, %v532
        %v587 = vpack.c.b16 %v535, %v534
        %v588 = vpack.c.b16 %v537, %v536
        %v589 = vpack.c.b16 %v539, %v538
        %v590 = vpack.c.b16 %v541, %v540
        %v591 = vpack.c.b16 %v543, %v542
        %640 = vmatprep.subr.bf16.mxu0 0
        %641 = vmatpush1.bf16.msra.mxu0 %v544
        %642 = vmatprep.subr.bf16.mxu0 0
        %643 = vmatpush1.bf16.msra.mxu0 %v545
        %644 = vmatprep.subr.bf16.mxu0 0
        %645 = vmatpush1.bf16.msra.mxu0 %v546
        %646 = vmatprep.subr.bf16.mxu0 0
        %647 = vmatpush1.bf16.msra.mxu0 %v547
        %648 = vmatprep.subr.bf16.mxu0 0
        %649 = vmatpush1.bf16.msra.mxu0 %v548
        %650 = vmatprep.subr.bf16.mxu0 0
        %651 = vmatpush1.bf16.msra.mxu0 %v549
        %652 = vmatprep.subr.bf16.mxu0 0
        %653 = vmatpush1.bf16.msra.mxu0 %v550
        %654 = vmatprep.subr.bf16.mxu0 0
        %655 = vmatpush1.bf16.msra.mxu0 %v551
        %656 = vmatprep.subr.bf16.mxu0 0
        %657 = vmatpush1.bf16.msra.mxu0 %v552
        %658 = vmatprep.subr.bf16.mxu0 0
        %659 = vmatpush1.bf16.msra.mxu0 %v553
        %660 = vmatprep.subr.bf16.mxu0 0
        %661 = vmatpush1.bf16.msra.mxu0 %v554
        %662 = vmatprep.subr.bf16.mxu0 0
        %663 = vmatpush1.bf16.msra.mxu0 %v555
        %664 = vmatprep.subr.bf16.mxu0 0
        %665 = vmatpush1.bf16.msra.mxu0 %v556
        %666 = vmatprep.subr.bf16.mxu0 0
        %667 = vmatpush1.bf16.msra.mxu0 %v557
        %668 = vmatprep.subr.bf16.mxu0 0
        %669 = vmatpush1.bf16.msra.mxu0 %v558
        %670 = vmatprep.subr.bf16.mxu0 0
        %671 = vmatpush1.bf16.msra.mxu0 %v559
        %672 = vmatprep.mubr.bf16.mxu0 %v246
        %673 = vmatmul.mubr.bf16.gmra.mrb[0].mxu0 %v245
        %v674 = vpop.f32.mrb[0].mxu0
        %v675 = vadd.f32 %v351, %v674
        %v676 = vpop.f32.mrb[0].mxu0
        %v677 = vpop.f32.mrb[0].mxu0
        %v678 = vpop.f32.mrb[0].mxu0
        %679 = vdwg.mxu0
        %680 = vmatprep.subr.bf16.mxu0 0
        %681 = vmatpush1.bf16.msra.mxu0 %v560
        %682 = vmatprep.subr.bf16.mxu0 0
        %683 = vmatpush1.bf16.msra.mxu0 %v561
        %684 = vmatprep.subr.bf16.mxu0 0
        %685 = vmatpush1.bf16.msra.mxu0 %v562
        %686 = vmatprep.subr.bf16.mxu0 0
        %687 = vmatpush1.bf16.msra.mxu0 %v563
        %688 = vmatprep.subr.bf16.mxu0 0
        %689 = vmatpush1.bf16.msra.mxu0 %v564
        %690 = vmatprep.subr.bf16.mxu0 0
        %691 = vmatpush1.bf16.msra.mxu0 %v565
        %692 = vmatprep.subr.bf16.mxu0 0
        %693 = vmatpush1.bf16.msra.mxu0 %v566
        %694 = vmatprep.subr.bf16.mxu0 0
        %695 = vmatpush1.bf16.msra.mxu0 %v567
        %696 = vmatprep.subr.bf16.mxu0 0
        %697 = vmatpush1.bf16.msra.mxu0 %v568
        %698 = vmatprep.subr.bf16.mxu0 0
        %699 = vmatpush1.bf16.msra.mxu0 %v569
        %700 = vmatprep.subr.bf16.mxu0 0
        %701 = vmatpush1.bf16.msra.mxu0 %v570
        %702 = vmatprep.subr.bf16.mxu0 0
        %703 = vmatpush1.bf16.msra.mxu0 %v571
        %704 = vmatprep.subr.bf16.mxu0 0
        %705 = vmatpush1.bf16.msra.mxu0 %v572
        %706 = vmatprep.subr.bf16.mxu0 0
        %707 = vmatpush1.bf16.msra.mxu0 %v573
        %708 = vmatprep.subr.bf16.mxu0 0
        %709 = vmatpush1.bf16.msra.mxu0 %v574
        %710 = vmatprep.subr.bf16.mxu0 0
        %711 = vmatpush1.bf16.msra.mxu0 %v575
        %712 = vmatprep.mubr.bf16.mxu0 %v248
        %713 = vmatmul.mubr.bf16.gmra.mrb[0].mxu0 %v247
        %v714 = vpop.f32.mrb[0].mxu0
        %v715 = vadd.f32 %v675, %v714
        %v716 = vpop.f32.mrb[0].mxu0
        %v717 = vpop.f32.mrb[0].mxu0
        %v718 = vpop.f32.mrb[0].mxu0
        %719 = vdwg.mxu0
        %720 = vmatprep.subr.bf16.mxu0 0
        %721 = vmatpush1.bf16.msra.mxu0 %v576
        %722 = vmatprep.subr.bf16.mxu0 0
        %723 = vmatpush1.bf16.msra.mxu0 %v577
        %724 = vmatprep.subr.bf16.mxu0 0
        %725 = vmatpush1.bf16.msra.mxu0 %v578
        %726 = vmatprep.subr.bf16.mxu0 0
        %727 = vmatpush1.bf16.msra.mxu0 %v579
        %728 = vmatprep.subr.bf16.mxu0 0
        %729 = vmatpush1.bf16.msra.mxu0 %v580
        %730 = vmatprep.subr.bf16.mxu0 0
        %731 = vmatpush1.bf16.msra.mxu0 %v581
        %732 = vmatprep.subr.bf16.mxu0 0
        %733 = vmatpush1.bf16.msra.mxu0 %v582
        %734 = vmatprep.subr.bf16.mxu0 0
        %735 = vmatpush1.bf16.msra.mxu0 %v583
        %736 = vmatprep.subr.bf16.mxu0 0
        %737 = vmatpush1.bf16.msra.mxu0 %v584
        %738 = vmatprep.subr.bf16.mxu0 0
        %739 = vmatpush1.bf16.msra.mxu0 %v585
        %740 = vmatprep.subr.bf16.mxu0 0
        %741 = vmatpush1.bf16.msra.mxu0 %v586
        %742 = vmatprep.subr.bf16.mxu0 0
        %743 = vmatpush1.bf16.msra.mxu0 %v587
        %744 = vmatprep.subr.bf16.mxu0 0
        %745 = vmatpush1.bf16.msra.mxu0 %v588
        %746 = vmatprep.subr.bf16.mxu0 0
        %747 = vmatpush1.bf16.msra.mxu0 %v589
        %748 = vmatprep.subr.bf16.mxu0 0
        %749 = vmatpush1.bf16.msra.mxu0 %v590
        %750 = vmatprep.subr.bf16.mxu0 0
        %751 = vmatpush1.bf16.msra.mxu0 %v591
        %752 = vmatprep.mubr.bf16.mxu0 %v250
        %753 = vmatmul.mubr.bf16.gmra.mrb[0].mxu0 %v249
        %v754 = vpop.f32.mrb[0].mxu0
        %v755 = vadd.f32 %v715, %v754
        %v756 = vpop.f32.mrb[0].mxu0
        %v757 = vpop.f32.mrb[0].mxu0
        %v758 = vpop.f32.mrb[0].mxu0
        %759 = vdwg.mxu0
        %v760 = vmax.f32 %v755, 0.0
        %v761 = vlaneseq
        %v762 = vshrl.u32 %v761, 7
        %vm763 = vcmp.lt.s32.totalorder %v762, 0
        %v764 = vsub.s32 0, %v762
        %v765 = vsel %vm763, %v764, %v762
        %v766 = vshrl.u32 %v765, 1
        %v767 = vand.u32 %v765, 1
        %v768 = vsub.s32 0, %v767
        %v769 = vsel %vm763, %v768, %v767
        %vm770 = vcmp.ne.s32.totalorder %v769, 0
        %vm771 = vcmp.lt.s32.totalorder %v769, 0
        %vm772 = vmand %vm771, %vm770
        %v773 = vadd.s32 %v769, 2
        %v774 = vsel %vm772, %v773, %v769
        %vm775 = vcmp.eq.s32.totalorder %v774, 0
        %v776 = vrot.slane %v760, 1
        %v777 = vrot.slane %v760, 7
        %v778 = vsel %vm775, %v776, %v777
        %v779 = vadd.f32 %v760, %v778
        %v780 = vmul.f32 %v779, 0.5
        %vm781 = vcmp.lt.s32.totalorder %v762, 2
        %vm782 = vcmp.ge.s32.totalorder %v762, 6
        %v783 = vrot.slane %v780, 6
        %v784 = vsel %vm781, 0.0, %v783
        %v785 = vrot.slane %v780, 2
        %v786 = vsel %vm782, 0.0, %v785
        %v787 = vpack.c.bf16 %v784, %v784
        %v788 = vld [vmem:[%s2] sm:$0xf]
        %v789 = vld [vmem:[%s2 + $0x4] sm:$0xf]
        %v790 = vld [vmem:[%s2 + $0x8] sm:$0xf]
        %v791 = vld [vmem:[%s2 + $0xc] sm:$0xf]
        %v792 = vld [vmem:[%s2 + $0x10] sm:$0xf]
        %v793 = vld [vmem:[%s2 + $0x14] sm:$0xf]
        %v794 = vld [vmem:[%s2 + $0x18] sm:$0xf]
        %v795 = vld [vmem:[%s2 + $0x1c] sm:$0xf]
        %v796 = vld [vmem:[%s2 + $0x20] sm:$0xf]
        %v797 = vld [vmem:[%s2 + $0x24] sm:$0xf]
        %v798 = vld [vmem:[%s2 + $0x28] sm:$0xf]
        %v799 = vld [vmem:[%s2 + $0x2c] sm:$0xf]
        %v800 = vld [vmem:[%s2 + $0x30] sm:$0xf]
        %v801 = vld [vmem:[%s2 + $0x34] sm:$0xf]
        %v802 = vld [vmem:[%s2 + $0x38] sm:$0xf]
        %v803 = vld [vmem:[%s2 + $0x3c] sm:$0xf]
        %v804 = vpack.c.bf16 %v780, %v780
        %s805 = scalar_lea.vmem %s2, 64
        %v806 = vld [vmem:[%s805] sm:$0xf]
        %v807 = vld [vmem:[%s805 + $0x4] sm:$0xf]
        %v808 = vld [vmem:[%s805 + $0x8] sm:$0xf]
        %v809 = vld [vmem:[%s805 + $0xc] sm:$0xf]
        %v810 = vld [vmem:[%s805 + $0x10] sm:$0xf]
        %v811 = vld [vmem:[%s805 + $0x14] sm:$0xf]
        %v812 = vld [vmem:[%s805 + $0x18] sm:$0xf]
        %v813 = vld [vmem:[%s805 + $0x1c] sm:$0xf]
        %v814 = vld [vmem:[%s805 + $0x20] sm:$0xf]
        %v815 = vld [vmem:[%s805 + $0x24] sm:$0xf]
        %v816 = vld [vmem:[%s805 + $0x28] sm:$0xf]
        %v817 = vld [vmem:[%s805 + $0x2c] sm:$0xf]
        %v818 = vld [vmem:[%s805 + $0x30] sm:$0xf]
        %v819 = vld [vmem:[%s805 + $0x34] sm:$0xf]
        %v820 = vld [vmem:[%s805 + $0x38] sm:$0xf]
        %v821 = vld [vmem:[%s805 + $0x3c] sm:$0xf]
        %v838 = vunpack.c.l.b16 %v806
        %v839 = vunpack.c.l.b16 %v807
        %v840 = vunpack.c.l.b16 %v808
        %v841 = vunpack.c.l.b16 %v809
        %v842 = vunpack.c.l.b16 %v810
        %v843 = vunpack.c.l.b16 %v811
        %v844 = vunpack.c.l.b16 %v812
        %v845 = vunpack.c.l.b16 %v813
        %v846 = vunpack.c.l.b16 %v814
        %v847 = vunpack.c.l.b16 %v815
        %v848 = vunpack.c.l.b16 %v816
        %v849 = vunpack.c.l.b16 %v817
        %v850 = vunpack.c.l.b16 %v818
        %v851 = vunpack.c.l.b16 %v819
        %v852 = vunpack.c.l.b16 %v820
        %v853 = vunpack.c.l.b16 %v821
        %v854 = vpack.c.b16 %v839, %v838
        %v855 = vpack.c.b16 %v841, %v840
        %v856 = vpack.c.b16 %v843, %v842
        %v857 = vpack.c.b16 %v845, %v844
        %v858 = vpack.c.b16 %v847, %v846
        %v859 = vpack.c.b16 %v849, %v848
        %v860 = vpack.c.b16 %v851, %v850
        %v861 = vpack.c.b16 %v853, %v852
        %870 = vmatprep.subr.bf16.mxu0 0
        %871 = vmatpush1.bf16.msra.mxu0 %v854
        %872 = vmatprep.subr.bf16.mxu0 0
        %873 = vmatpush1.bf16.msra.mxu0 %v855
        %874 = vmatprep.subr.bf16.mxu0 0
        %875 = vmatpush1.bf16.msra.mxu0 %v856
        %876 = vmatprep.subr.bf16.mxu0 0
        %877 = vmatpush1.bf16.msra.mxu0 %v857
        %878 = vmatprep.subr.bf16.mxu0 0
        %879 = vmatpush1.bf16.msra.mxu0 %v858
        %880 = vmatprep.subr.bf16.mxu0 0
        %881 = vmatpush1.bf16.msra.mxu0 %v859
        %882 = vmatprep.subr.bf16.mxu0 0
        %883 = vmatpush1.bf16.msra.mxu0 %v860
        %884 = vmatprep.subr.bf16.mxu0 0
        %885 = vmatpush1.bf16.msra.mxu0 %v861
        %886 = vmatprep.subr.bf16.mxu0 0
        %887 = vmatpush1.bf16.msra.mxu0 0
        %888 = vmatprep.subr.bf16.mxu0 0
        %889 = vmatpush1.bf16.msra.mxu0 0
        %890 = vmatprep.subr.bf16.mxu0 0
        %891 = vmatpush1.bf16.msra.mxu0 0
        %892 = vmatprep.subr.bf16.mxu0 0
        %893 = vmatpush1.bf16.msra.mxu0 0
        %894 = vmatprep.subr.bf16.mxu0 0
        %895 = vmatpush1.bf16.msra.mxu0 0
        %896 = vmatprep.subr.bf16.mxu0 0
        %897 = vmatpush1.bf16.msra.mxu0 0
        %898 = vmatprep.subr.bf16.mxu0 0
        %899 = vmatpush1.bf16.msra.mxu0 0
        %900 = vmatprep.subr.bf16.mxu0 0
        %901 = vmatpush1.bf16.msra.mxu0 0
        %902 = vmatprep.mubr.bf16.mxu0 0
        %903 = vmatmul.mubr.bf16.gmra.mrb[0].mxu0 %v804
        %v904 = vpop.f32.mrb[0].mxu0
        %v905 = vadd.f32 0.0, %v904
        %v906 = vpop.f32.mrb[0].mxu0
        %v907 = vpop.f32.mrb[0].mxu0
        %v908 = vpop.f32.mrb[0].mxu0
        %909 = vdwg.mxu0
        %v926 = vunpack.c.l.b16 %v788
        %v927 = vunpack.c.l.b16 %v789
        %v928 = vunpack.c.l.b16 %v790
        %v929 = vunpack.c.l.b16 %v791
        %v930 = vunpack.c.l.b16 %v792
        %v931 = vunpack.c.l.b16 %v793
        %v932 = vunpack.c.l.b16 %v794
        %v933 = vunpack.c.l.b16 %v795
        %v934 = vunpack.c.l.b16 %v796
        %v935 = vunpack.c.l.b16 %v797
        %v936 = vunpack.c.l.b16 %v798
        %v937 = vunpack.c.l.b16 %v799
        %v938 = vunpack.c.l.b16 %v800
        %v939 = vunpack.c.l.b16 %v801
        %v940 = vunpack.c.l.b16 %v802
        %v941 = vunpack.c.l.b16 %v803
        %v942 = vpack.c.b16 %v927, %v926
        %v943 = vpack.c.b16 %v929, %v928
        %v944 = vpack.c.b16 %v931, %v930
        %v945 = vpack.c.b16 %v933, %v932
        %v946 = vpack.c.b16 %v935, %v934
        %v947 = vpack.c.b16 %v937, %v936
        %v948 = vpack.c.b16 %v939, %v938
        %v949 = vpack.c.b16 %v941, %v940
        %958 = vmatprep.subr.bf16.mxu0 0
        %959 = vmatpush1.bf16.msra.mxu0 %v942
        %960 = vmatprep.subr.bf16.mxu0 0
        %961 = vmatpush1.bf16.msra.mxu0 %v943
        %962 = vmatprep.subr.bf16.mxu0 0
        %963 = vmatpush1.bf16.msra.mxu0 %v944
        %964 = vmatprep.subr.bf16.mxu0 0
        %965 = vmatpush1.bf16.msra.mxu0 %v945
        %966 = vmatprep.subr.bf16.mxu0 0
        %967 = vmatpush1.bf16.msra.mxu0 %v946
        %968 = vmatprep.subr.bf16.mxu0 0
        %969 = vmatpush1.bf16.msra.mxu0 %v947
        %970 = vmatprep.subr.bf16.mxu0 0
        %971 = vmatpush1.bf16.msra.mxu0 %v948
        %972 = vmatprep.subr.bf16.mxu0 0
        %973 = vmatpush1.bf16.msra.mxu0 %v949
        %974 = vmatprep.subr.bf16.mxu0 0
        %975 = vmatpush1.bf16.msra.mxu0 0
        %976 = vmatprep.subr.bf16.mxu0 0
        %977 = vmatpush1.bf16.msra.mxu0 0
        %978 = vmatprep.subr.bf16.mxu0 0
        %979 = vmatpush1.bf16.msra.mxu0 0
        %980 = vmatprep.subr.bf16.mxu0 0
        %981 = vmatpush1.bf16.msra.mxu0 0
        %982 = vmatprep.subr.bf16.mxu0 0
        %983 = vmatpush1.bf16.msra.mxu0 0
        %984 = vmatprep.subr.bf16.mxu0 0
        %985 = vmatpush1.bf16.msra.mxu0 0
        %986 = vmatprep.subr.bf16.mxu0 0
        %987 = vmatpush1.bf16.msra.mxu0 0
        %988 = vmatprep.subr.bf16.mxu0 0
        %989 = vmatpush1.bf16.msra.mxu0 0
        %990 = vmatprep.mubr.bf16.mxu0 0
        %991 = vmatmul.mubr.bf16.gmra.mrb[0].mxu0 %v787
        %v992 = vpop.f32.mrb[0].mxu0
        %v993 = vadd.f32 %v905, %v992
        %v994 = vpop.f32.mrb[0].mxu0
        %v995 = vpop.f32.mrb[0].mxu0
        %v996 = vpop.f32.mrb[0].mxu0
        %997 = vdwg.mxu0
        %v998 = vpack.c.bf16 %v786, %v786
        %s999 = scalar_lea.vmem %s2, 128
        %v1000 = vld [vmem:[%s999] sm:$0xf]
        %v1001 = vld [vmem:[%s999 + $0x4] sm:$0xf]
        %v1002 = vld [vmem:[%s999 + $0x8] sm:$0xf]
        %v1003 = vld [vmem:[%s999 + $0xc] sm:$0xf]
        %v1004 = vld [vmem:[%s999 + $0x10] sm:$0xf]
        %v1005 = vld [vmem:[%s999 + $0x14] sm:$0xf]
        %v1006 = vld [vmem:[%s999 + $0x18] sm:$0xf]
        %v1007 = vld [vmem:[%s999 + $0x1c] sm:$0xf]
        %v1008 = vld [vmem:[%s999 + $0x20] sm:$0xf]
        %v1009 = vld [vmem:[%s999 + $0x24] sm:$0xf]
        %v1010 = vld [vmem:[%s999 + $0x28] sm:$0xf]
        %v1011 = vld [vmem:[%s999 + $0x2c] sm:$0xf]
        %v1012 = vld [vmem:[%s999 + $0x30] sm:$0xf]
        %v1013 = vld [vmem:[%s999 + $0x34] sm:$0xf]
        %v1014 = vld [vmem:[%s999 + $0x38] sm:$0xf]
        %v1015 = vld [vmem:[%s999 + $0x3c] sm:$0xf]
        %v1032 = vunpack.c.l.b16 %v1000
        %v1033 = vunpack.c.l.b16 %v1001
        %v1034 = vunpack.c.l.b16 %v1002
        %v1035 = vunpack.c.l.b16 %v1003
        %v1036 = vunpack.c.l.b16 %v1004
        %v1037 = vunpack.c.l.b16 %v1005
        %v1038 = vunpack.c.l.b16 %v1006
        %v1039 = vunpack.c.l.b16 %v1007
        %v1040 = vunpack.c.l.b16 %v1008
        %v1041 = vunpack.c.l.b16 %v1009
        %v1042 = vunpack.c.l.b16 %v1010
        %v1043 = vunpack.c.l.b16 %v1011
        %v1044 = vunpack.c.l.b16 %v1012
        %v1045 = vunpack.c.l.b16 %v1013
        %v1046 = vunpack.c.l.b16 %v1014
        %v1047 = vunpack.c.l.b16 %v1015
        %v1048 = vpack.c.b16 %v1033, %v1032
        %v1049 = vpack.c.b16 %v1035, %v1034
        %v1050 = vpack.c.b16 %v1037, %v1036
        %v1051 = vpack.c.b16 %v1039, %v1038
        %v1052 = vpack.c.b16 %v1041, %v1040
        %v1053 = vpack.c.b16 %v1043, %v1042
        %v1054 = vpack.c.b16 %v1045, %v1044
        %v1055 = vpack.c.b16 %v1047, %v1046
        %1064 = vmatprep.subr.bf16.mxu0 0
        %1065 = vmatpush1.bf16.msra.mxu0 %v1048
        %1066 = vmatprep.subr.bf16.mxu0 0
        %1067 = vmatpush1.bf16.msra.mxu0 %v1049
        %1068 = vmatprep.subr.bf16.mxu0 0
        %1069 = vmatpush1.bf16.msra.mxu0 %v1050
        %1070 = vmatprep.subr.bf16.mxu0 0
        %1071 = vmatpush1.bf16.msra.mxu0 %v1051
        %1072 = vmatprep.subr.bf16.mxu0 0
        %1073 = vmatpush1.bf16.msra.mxu0 %v1052
        %1074 = vmatprep.subr.bf16.mxu0 0
        %1075 = vmatpush1.bf16.msra.mxu0 %v1053
        %1076 = vmatprep.subr.bf16.mxu0 0
        %1077 = vmatpush1.bf16.msra.mxu0 %v1054
        %1078 = vmatprep.subr.bf16.mxu0 0
        %1079 = vmatpush1.bf16.msra.mxu0 %v1055
        %1080 = vmatprep.subr.bf16.mxu0 0
        %1081 = vmatpush1.bf16.msra.mxu0 0
        %1082 = vmatprep.subr.bf16.mxu0 0
        %1083 = vmatpush1.bf16.msra.mxu0 0
        %1084 = vmatprep.subr.bf16.mxu0 0
        %1085 = vmatpush1.bf16.msra.mxu0 0
        %1086 = vmatprep.subr.bf16.mxu0 0
        %1087 = vmatpush1.bf16.msra.mxu0 0
        %1088 = vmatprep.subr.bf16.mxu0 0
        %1089 = vmatpush1.bf16.msra.mxu0 0
        %1090 = vmatprep.subr.bf16.mxu0 0
        %1091 = vmatpush1.bf16.msra.mxu0 0
        %1092 = vmatprep.subr.bf16.mxu0 0
        %1093 = vmatpush1.bf16.msra.mxu0 0
        %1094 = vmatprep.subr.bf16.mxu0 0
        %1095 = vmatpush1.bf16.msra.mxu0 0
        %1096 = vmatprep.mubr.bf16.mxu0 0
        %1097 = vmatmul.mubr.bf16.gmra.mrb[0].mxu0 %v998
        %v1098 = vpop.f32.mrb[0].mxu0
        %v1099 = vadd.f32 0.0, %v1098
        %v1100 = vpop.f32.mrb[0].mxu0
        %v1101 = vpop.f32.mrb[0].mxu0
        %v1102 = vpop.f32.mrb[0].mxu0
        %1103 = vdwg.mxu0
        %v1104 = vadd.f32 %v993, %v1099
        %v1105 = vld [vmem:[%s4 + $0x1] sm:$0x1]
        %v1106 = vlaneseq
        %v1107 = vshrl.u32 %v1106, 7
        %v1108 = vsub.s32 0, %v1107
        %v1109 = vrot.slane %v1105, %v1108
        %v1110 = vadd.f32 %v1104, %v1109
        %v1111 = vmax.f32 %v1110, 0.0
        %v1112 = vadd.f32 %v1111, %v780
        %v1113 = vrot.slane %v1112, 6
        %v1114 = vsel %vm781, 0.0, %v1113
        %v1115 = vrot.slane %v1112, 2
        %v1116 = vsel %vm782, 0.0, %v1115
        %v1117 = vpack.c.bf16 %v1114, %v1114
        %s1118 = scalar_lea.vmem %s2, 192
        %v1119 = vld [vmem:[%s1118] sm:$0xf]
        %v1120 = vld [vmem:[%s1118 + $0x4] sm:$0xf]
        %v1121 = vld [vmem:[%s1118 + $0x8] sm:$0xf]
        %v1122 = vld [vmem:[%s1118 + $0xc] sm:$0xf]
        %v1123 = vld [vmem:[%s1118 + $0x10] sm:$0xf]
        %v1124 = vld [vmem:[%s1118 + $0x14] sm:$0xf]
        %v1125 = vld [vmem:[%s1118 + $0x18] sm:$0xf]
        %v1126 = vld [vmem:[%s1118 + $0x1c] sm:$0xf]
        %v1127 = vld [vmem:[%s1118 + $0x20] sm:$0xf]
        %v1128 = vld [vmem:[%s1118 + $0x24] sm:$0xf]
        %v1129 = vld [vmem:[%s1118 + $0x28] sm:$0xf]
        %v1130 = vld [vmem:[%s1118 + $0x2c] sm:$0xf]
        %v1131 = vld [vmem:[%s1118 + $0x30] sm:$0xf]
        %v1132 = vld [vmem:[%s1118 + $0x34] sm:$0xf]
        %v1133 = vld [vmem:[%s1118 + $0x38] sm:$0xf]
        %v1134 = vld [vmem:[%s1118 + $0x3c] sm:$0xf]
        %v1135 = vpack.c.bf16 %v1112, %v1112
        %s1136 = scalar_lea.vmem %s2, 256
        %v1137 = vld [vmem:[%s1136] sm:$0xf]
        %v1138 = vld [vmem:[%s1136 + $0x4] sm:$0xf]
        %v1139 = vld [vmem:[%s1136 + $0x8] sm:$0xf]
        %v1140 = vld [vmem:[%s1136 + $0xc] sm:$0xf]
        %v1141 = vld [vmem:[%s1136 + $0x10] sm:$0xf]
        %v1142 = vld [vmem:[%s1136 + $0x14] sm:$0xf]
        %v1143 = vld [vmem:[%s1136 + $0x18] sm:$0xf]
        %v1144 = vld [vmem:[%s1136 + $0x1c] sm:$0xf]
        %v1145 = vld [vmem:[%s1136 + $0x20] sm:$0xf]
        %v1146 = vld [vmem:[%s1136 + $0x24] sm:$0xf]
        %v1147 = vld [vmem:[%s1136 + $0x28] sm:$0xf]
        %v1148 = vld [vmem:[%s1136 + $0x2c] sm:$0xf]
        %v1149 = vld [vmem:[%s1136 + $0x30] sm:$0xf]
        %v1150 = vld [vmem:[%s1136 + $0x34] sm:$0xf]
        %v1151 = vld [vmem:[%s1136 + $0x38] sm:$0xf]
        %v1152 = vld [vmem:[%s1136 + $0x3c] sm:$0xf]
        %v1169 = vunpack.c.l.b16 %v1137
        %v1170 = vunpack.c.l.b16 %v1138
        %v1171 = vunpack.c.l.b16 %v1139
        %v1172 = vunpack.c.l.b16 %v1140
        %v1173 = vunpack.c.l.b16 %v1141
        %v1174 = vunpack.c.l.b16 %v1142
        %v1175 = vunpack.c.l.b16 %v1143
        %v1176 = vunpack.c.l.b16 %v1144
        %v1177 = vunpack.c.l.b16 %v1145
        %v1178 = vunpack.c.l.b16 %v1146
        %v1179 = vunpack.c.l.b16 %v1147
        %v1180 = vunpack.c.l.b16 %v1148
        %v1181 = vunpack.c.l.b16 %v1149
        %v1182 = vunpack.c.l.b16 %v1150
        %v1183 = vunpack.c.l.b16 %v1151
        %v1184 = vunpack.c.l.b16 %v1152
        %v1185 = vpack.c.b16 %v1170, %v1169
        %v1186 = vpack.c.b16 %v1172, %v1171
        %v1187 = vpack.c.b16 %v1174, %v1173
        %v1188 = vpack.c.b16 %v1176, %v1175
        %v1189 = vpack.c.b16 %v1178, %v1177
        %v1190 = vpack.c.b16 %v1180, %v1179
        %v1191 = vpack.c.b16 %v1182, %v1181
        %v1192 = vpack.c.b16 %v1184, %v1183
        %1201 = vmatprep.subr.bf16.mxu0 0
        %1202 = vmatpush1.bf16.msra.mxu0 %v1185
        %1203 = vmatprep.subr.bf16.mxu0 0
        %1204 = vmatpush1.bf16.msra.mxu0 %v1186
        %1205 = vmatprep.subr.bf16.mxu0 0
        %1206 = vmatpush1.bf16.msra.mxu0 %v1187
        %1207 = vmatprep.subr.bf16.mxu0 0
        %1208 = vmatpush1.bf16.msra.mxu0 %v1188
        %1209 = vmatprep.subr.bf16.mxu0 0
        %1210 = vmatpush1.bf16.msra.mxu0 %v1189
        %1211 = vmatprep.subr.bf16.mxu0 0
        %1212 = vmatpush1.bf16.msra.mxu0 %v1190
        %1213 = vmatprep.subr.bf16.mxu0 0
        %1214 = vmatpush1.bf16.msra.mxu0 %v1191
        %1215 = vmatprep.subr.bf16.mxu0 0
        %1216 = vmatpush1.bf16.msra.mxu0 %v1192
        %1217 = vmatprep.subr.bf16.mxu0 0
        %1218 = vmatpush1.bf16.msra.mxu0 0
        %1219 = vmatprep.subr.bf16.mxu0 0
        %1220 = vmatpush1.bf16.msra.mxu0 0
        %1221 = vmatprep.subr.bf16.mxu0 0
        %1222 = vmatpush1.bf16.msra.mxu0 0
        %1223 = vmatprep.subr.bf16.mxu0 0
        %1224 = vmatpush1.bf16.msra.mxu0 0
        %1225 = vmatprep.subr.bf16.mxu0 0
        %1226 = vmatpush1.bf16.msra.mxu0 0
        %1227 = vmatprep.subr.bf16.mxu0 0
        %1228 = vmatpush1.bf16.msra.mxu0 0
        %1229 = vmatprep.subr.bf16.mxu0 0
        %1230 = vmatpush1.bf16.msra.mxu0 0
        %1231 = vmatprep.subr.bf16.mxu0 0
        %1232 = vmatpush1.bf16.msra.mxu0 0
        %1233 = vmatprep.mubr.bf16.mxu0 0
        %1234 = vmatmul.mubr.bf16.gmra.mrb[0].mxu0 %v1135
        %v1235 = vpop.f32.mrb[0].mxu0
        %v1236 = vadd.f32 0.0, %v1235
        %v1237 = vpop.f32.mrb[0].mxu0
        %v1238 = vpop.f32.mrb[0].mxu0
        %v1239 = vpop.f32.mrb[0].mxu0
        %1240 = vdwg.mxu0
        %v1257 = vunpack.c.l.b16 %v1119
        %v1258 = vunpack.c.l.b16 %v1120
        %v1259 = vunpack.c.l.b16 %v1121
        %v1260 = vunpack.c.l.b16 %v1122
        %v1261 = vunpack.c.l.b16 %v1123
        %v1262 = vunpack.c.l.b16 %v1124
        %v1263 = vunpack.c.l.b16 %v1125
        %v1264 = vunpack.c.l.b16 %v1126
        %v1265 = vunpack.c.l.b16 %v1127
        %v1266 = vunpack.c.l.b16 %v1128
        %v1267 = vunpack.c.l.b16 %v1129
        %v1268 = vunpack.c.l.b16 %v1130
        %v1269 = vunpack.c.l.b16 %v1131
        %v1270 = vunpack.c.l.b16 %v1132
        %v1271 = vunpack.c.l.b16 %v1133
        %v1272 = vunpack.c.l.b16 %v1134
        %v1273 = vpack.c.b16 %v1258, %v1257
        %v1274 = vpack.c.b16 %v1260, %v1259
        %v1275 = vpack.c.b16 %v1262, %v1261
        %v1276 = vpack.c.b16 %v1264, %v1263
        %v1277 = vpack.c.b16 %v1266, %v1265
        %v1278 = vpack.c.b16 %v1268, %v1267
        %v1279 = vpack.c.b16 %v1270, %v1269
        %v1280 = vpack.c.b16 %v1272, %v1271
        %1289 = vmatprep.subr.bf16.mxu0 0
        %1290 = vmatpush1.bf16.msra.mxu0 %v1273
        %1291 = vmatprep.subr.bf16.mxu0 0
        %1292 = vmatpush1.bf16.msra.mxu0 %v1274
        %1293 = vmatprep.subr.bf16.mxu0 0
        %1294 = vmatpush1.bf16.msra.mxu0 %v1275
        %1295 = vmatprep.subr.bf16.mxu0 0
        %1296 = vmatpush1.bf16.msra.mxu0 %v1276
        %1297 = vmatprep.subr.bf16.mxu0 0
        %1298 = vmatpush1.bf16.msra.mxu0 %v1277
        %1299 = vmatprep.subr.bf16.mxu0 0
        %1300 = vmatpush1.bf16.msra.mxu0 %v1278
        %1301 = vmatprep.subr.bf16.mxu0 0
        %1302 = vmatpush1.bf16.msra.mxu0 %v1279
        %1303 = vmatprep.subr.bf16.mxu0 0
        %1304 = vmatpush1.bf16.msra.mxu0 %v1280
        %1305 = vmatprep.subr.bf16.mxu0 0
        %1306 = vmatpush1.bf16.msra.mxu0 0
        %1307 = vmatprep.subr.bf16.mxu0 0
        %1308 = vmatpush1.bf16.msra.mxu0 0
        %1309 = vmatprep.subr.bf16.mxu0 0
        %1310 = vmatpush1.bf16.msra.mxu0 0
        %1311 = vmatprep.subr.bf16.mxu0 0
        %1312 = vmatpush1.bf16.msra.mxu0 0
        %1313 = vmatprep.subr.bf16.mxu0 0
        %1314 = vmatpush1.bf16.msra.mxu0 0
        %1315 = vmatprep.subr.bf16.mxu0 0
        %1316 = vmatpush1.bf16.msra.mxu0 0
        %1317 = vmatprep.subr.bf16.mxu0 0
        %1318 = vmatpush1.bf16.msra.mxu0 0
        %1319 = vmatprep.subr.bf16.mxu0 0
        %1320 = vmatpush1.bf16.msra.mxu0 0
        %1321 = vmatprep.mubr.bf16.mxu0 0
        %1322 = vmatmul.mubr.bf16.gmra.mrb[0].mxu0 %v1117
        %v1323 = vpop.f32.mrb[0].mxu0
        %v1324 = vadd.f32 %v1236, %v1323
        %v1325 = vpop.f32.mrb[0].mxu0
        %v1326 = vpop.f32.mrb[0].mxu0
        %v1327 = vpop.f32.mrb[0].mxu0
        %1328 = vdwg.mxu0
        %v1329 = vpack.c.bf16 %v1116, %v1116
        %s1330 = scalar_lea.vmem %s2, 320
        %v1331 = vld [vmem:[%s1330] sm:$0xf]
        %v1332 = vld [vmem:[%s1330 + $0x4] sm:$0xf]
        %v1333 = vld [vmem:[%s1330 + $0x8] sm:$0xf]
        %v1334 = vld [vmem:[%s1330 + $0xc] sm:$0xf]
        %v1335 = vld [vmem:[%s1330 + $0x10] sm:$0xf]
        %v1336 = vld [vmem:[%s1330 + $0x14] sm:$0xf]
        %v1337 = vld [vmem:[%s1330 + $0x18] sm:$0xf]
        %v1338 = vld [vmem:[%s1330 + $0x1c] sm:$0xf]
        %v1339 = vld [vmem:[%s1330 + $0x20] sm:$0xf]
        %v1340 = vld [vmem:[%s1330 + $0x24] sm:$0xf]
        %v1341 = vld [vmem:[%s1330 + $0x28] sm:$0xf]
        %v1342 = vld [vmem:[%s1330 + $0x2c] sm:$0xf]
        %v1343 = vld [vmem:[%s1330 + $0x30] sm:$0xf]
        %v1344 = vld [vmem:[%s1330 + $0x34] sm:$0xf]
        %v1345 = vld [vmem:[%s1330 + $0x38] sm:$0xf]
        %v1346 = vld [vmem:[%s1330 + $0x3c] sm:$0xf]
        %v1363 = vunpack.c.l.b16 %v1331
        %v1364 = vunpack.c.l.b16 %v1332
        %v1365 = vunpack.c.l.b16 %v1333
        %v1366 = vunpack.c.l.b16 %v1334
        %v1367 = vunpack.c.l.b16 %v1335
        %v1368 = vunpack.c.l.b16 %v1336
        %v1369 = vunpack.c.l.b16 %v1337
        %v1370 = vunpack.c.l.b16 %v1338
        %v1371 = vunpack.c.l.b16 %v1339
        %v1372 = vunpack.c.l.b16 %v1340
        %v1373 = vunpack.c.l.b16 %v1341
        %v1374 = vunpack.c.l.b16 %v1342
        %v1375 = vunpack.c.l.b16 %v1343
        %v1376 = vunpack.c.l.b16 %v1344
        %v1377 = vunpack.c.l.b16 %v1345
        %v1378 = vunpack.c.l.b16 %v1346
        %v1379 = vpack.c.b16 %v1364, %v1363
        %v1380 = vpack.c.b16 %v1366, %v1365
        %v1381 = vpack.c.b16 %v1368, %v1367
        %v1382 = vpack.c.b16 %v1370, %v1369
        %v1383 = vpack.c.b16 %v1372, %v1371
        %v1384 = vpack.c.b16 %v1374, %v1373
        %v1385 = vpack.c.b16 %v1376, %v1375
        %v1386 = vpack.c.b16 %v1378, %v1377
        %1395 = vmatprep.subr.bf16.mxu0 0
        %1396 = vmatpush1.bf16.msra.mxu0 %v1379
        %1397 = vmatprep.subr.bf16.mxu0 0
        %1398 = vmatpush1.bf16.msra.mxu0 %v1380
        %1399 = vmatprep.subr.bf16.mxu0 0
        %1400 = vmatpush1.bf16.msra.mxu0 %v1381
        %1401 = vmatprep.subr.bf16.mxu0 0
        %1402 = vmatpush1.bf16.msra.mxu0 %v1382
        %1403 = vmatprep.subr.bf16.mxu0 0
        %1404 = vmatpush1.bf16.msra.mxu0 %v1383
        %1405 = vmatprep.subr.bf16.mxu0 0
        %1406 = vmatpush1.bf16.msra.mxu0 %v1384
        %1407 = vmatprep.subr.bf16.mxu0 0
        %1408 = vmatpush1.bf16.msra.mxu0 %v1385
        %1409 = vmatprep.subr.bf16.mxu0 0
        %1410 = vmatpush1.bf16.msra.mxu0 %v1386
        %1411 = vmatprep.subr.bf16.mxu0 0
        %1412 = vmatpush1.bf16.msra.mxu0 0
        %1413 = vmatprep.subr.bf16.mxu0 0
        %1414 = vmatpush1.bf16.msra.mxu0 0
        %1415 = vmatprep.subr.bf16.mxu0 0
        %1416 = vmatpush1.bf16.msra.mxu0 0
        %1417 = vmatprep.subr.bf16.mxu0 0
        %1418 = vmatpush1.bf16.msra.mxu0 0
        %1419 = vmatprep.subr.bf16.mxu0 0
        %1420 = vmatpush1.bf16.msra.mxu0 0
        %1421 = vmatprep.subr.bf16.mxu0 0
        %1422 = vmatpush1.bf16.msra.mxu0 0
        %1423 = vmatprep.subr.bf16.mxu0 0
        %1424 = vmatpush1.bf16.msra.mxu0 0
        %1425 = vmatprep.subr.bf16.mxu0 0
        %1426 = vmatpush1.bf16.msra.mxu0 0
        %1427 = vmatprep.mubr.bf16.mxu0 0
        %1428 = vmatmul.mubr.bf16.gmra.mrb[0].mxu0 %v1329
        %v1429 = vpop.f32.mrb[0].mxu0
        %v1430 = vadd.f32 0.0, %v1429
        %v1431 = vpop.f32.mrb[0].mxu0
        %v1432 = vpop.f32.mrb[0].mxu0
        %v1433 = vpop.f32.mrb[0].mxu0
        %1434 = vdwg.mxu0
        %v1435 = vadd.f32 %v1324, %v1430
        %v1436 = vld [vmem:[%s4 + $0x2] sm:$0x1]
        %v1437 = vlaneseq
        %v1438 = vshrl.u32 %v1437, 7
        %v1439 = vsub.s32 0, %v1438
        %v1440 = vrot.slane %v1436, %v1439
        %v1441 = vadd.f32 %v1435, %v1440
        %v1442 = vmax.f32 %v1441, 0.0
        %v1443 = vadd.f32 %v1442, %v1112
        %v1444 = vrot.slane %v1443, 6
        %v1445 = vsel %vm781, 0.0, %v1444
        %v1446 = vrot.slane %v1443, 2
        %v1447 = vsel %vm782, 0.0, %v1446
        %v1448 = vpack.c.bf16 %v1445, %v1445
        %s1449 = scalar_lea.vmem %s2, 384
        %v1450 = vld [vmem:[%s1449] sm:$0xf]
        %v1451 = vld [vmem:[%s1449 + $0x4] sm:$0xf]
        %v1452 = vld [vmem:[%s1449 + $0x8] sm:$0xf]
        %v1453 = vld [vmem:[%s1449 + $0xc] sm:$0xf]
        %v1454 = vld [vmem:[%s1449 + $0x10] sm:$0xf]
        %v1455 = vld [vmem:[%s1449 + $0x14] sm:$0xf]
        %v1456 = vld [vmem:[%s1449 + $0x18] sm:$0xf]
        %v1457 = vld [vmem:[%s1449 + $0x1c] sm:$0xf]
        %v1458 = vld [vmem:[%s1449 + $0x20] sm:$0xf]
        %v1459 = vld [vmem:[%s1449 + $0x24] sm:$0xf]
        %v1460 = vld [vmem:[%s1449 + $0x28] sm:$0xf]
        %v1461 = vld [vmem:[%s1449 + $0x2c] sm:$0xf]
        %v1462 = vld [vmem:[%s1449 + $0x30] sm:$0xf]
        %v1463 = vld [vmem:[%s1449 + $0x34] sm:$0xf]
        %v1464 = vld [vmem:[%s1449 + $0x38] sm:$0xf]
        %v1465 = vld [vmem:[%s1449 + $0x3c] sm:$0xf]
        %v1466 = vpack.c.bf16 %v1443, %v1443
        %s1467 = scalar_lea.vmem %s2, 448
        %v1468 = vld [vmem:[%s1467] sm:$0xf]
        %v1469 = vld [vmem:[%s1467 + $0x4] sm:$0xf]
        %v1470 = vld [vmem:[%s1467 + $0x8] sm:$0xf]
        %v1471 = vld [vmem:[%s1467 + $0xc] sm:$0xf]
        %v1472 = vld [vmem:[%s1467 + $0x10] sm:$0xf]
        %v1473 = vld [vmem:[%s1467 + $0x14] sm:$0xf]
        %v1474 = vld [vmem:[%s1467 + $0x18] sm:$0xf]
        %v1475 = vld [vmem:[%s1467 + $0x1c] sm:$0xf]
        %v1476 = vld [vmem:[%s1467 + $0x20] sm:$0xf]
        %v1477 = vld [vmem:[%s1467 + $0x24] sm:$0xf]
        %v1478 = vld [vmem:[%s1467 + $0x28] sm:$0xf]
        %v1479 = vld [vmem:[%s1467 + $0x2c] sm:$0xf]
        %v1480 = vld [vmem:[%s1467 + $0x30] sm:$0xf]
        %v1481 = vld [vmem:[%s1467 + $0x34] sm:$0xf]
        %v1482 = vld [vmem:[%s1467 + $0x38] sm:$0xf]
        %v1483 = vld [vmem:[%s1467 + $0x3c] sm:$0xf]
        %v1500 = vunpack.c.l.b16 %v1468
        %v1501 = vunpack.c.l.b16 %v1469
        %v1502 = vunpack.c.l.b16 %v1470
        %v1503 = vunpack.c.l.b16 %v1471
        %v1504 = vunpack.c.l.b16 %v1472
        %v1505 = vunpack.c.l.b16 %v1473
        %v1506 = vunpack.c.l.b16 %v1474
        %v1507 = vunpack.c.l.b16 %v1475
        %v1508 = vunpack.c.l.b16 %v1476
        %v1509 = vunpack.c.l.b16 %v1477
        %v1510 = vunpack.c.l.b16 %v1478
        %v1511 = vunpack.c.l.b16 %v1479
        %v1512 = vunpack.c.l.b16 %v1480
        %v1513 = vunpack.c.l.b16 %v1481
        %v1514 = vunpack.c.l.b16 %v1482
        %v1515 = vunpack.c.l.b16 %v1483
        %v1516 = vpack.c.b16 %v1501, %v1500
        %v1517 = vpack.c.b16 %v1503, %v1502
        %v1518 = vpack.c.b16 %v1505, %v1504
        %v1519 = vpack.c.b16 %v1507, %v1506
        %v1520 = vpack.c.b16 %v1509, %v1508
        %v1521 = vpack.c.b16 %v1511, %v1510
        %v1522 = vpack.c.b16 %v1513, %v1512
        %v1523 = vpack.c.b16 %v1515, %v1514
        %1532 = vmatprep.subr.bf16.mxu0 0
        %1533 = vmatpush1.bf16.msra.mxu0 %v1516
        %1534 = vmatprep.subr.bf16.mxu0 0
        %1535 = vmatpush1.bf16.msra.mxu0 %v1517
        %1536 = vmatprep.subr.bf16.mxu0 0
        %1537 = vmatpush1.bf16.msra.mxu0 %v1518
        %1538 = vmatprep.subr.bf16.mxu0 0
        %1539 = vmatpush1.bf16.msra.mxu0 %v1519
        %1540 = vmatprep.subr.bf16.mxu0 0
        %1541 = vmatpush1.bf16.msra.mxu0 %v1520
        %1542 = vmatprep.subr.bf16.mxu0 0
        %1543 = vmatpush1.bf16.msra.mxu0 %v1521
        %1544 = vmatprep.subr.bf16.mxu0 0
        %1545 = vmatpush1.bf16.msra.mxu0 %v1522
        %1546 = vmatprep.subr.bf16.mxu0 0
        %1547 = vmatpush1.bf16.msra.mxu0 %v1523
        %1548 = vmatprep.subr.bf16.mxu0 0
        %1549 = vmatpush1.bf16.msra.mxu0 0
        %1550 = vmatprep.subr.bf16.mxu0 0
        %1551 = vmatpush1.bf16.msra.mxu0 0
        %1552 = vmatprep.subr.bf16.mxu0 0
        %1553 = vmatpush1.bf16.msra.mxu0 0
        %1554 = vmatprep.subr.bf16.mxu0 0
        %1555 = vmatpush1.bf16.msra.mxu0 0
        %1556 = vmatprep.subr.bf16.mxu0 0
        %1557 = vmatpush1.bf16.msra.mxu0 0
        %1558 = vmatprep.subr.bf16.mxu0 0
        %1559 = vmatpush1.bf16.msra.mxu0 0
        %1560 = vmatprep.subr.bf16.mxu0 0
        %1561 = vmatpush1.bf16.msra.mxu0 0
        %1562 = vmatprep.subr.bf16.mxu0 0
        %1563 = vmatpush1.bf16.msra.mxu0 0
        %1564 = vmatprep.mubr.bf16.mxu0 0
        %1565 = vmatmul.mubr.bf16.gmra.mrb[0].mxu0 %v1466
        %v1566 = vpop.f32.mrb[0].mxu0
        %v1567 = vadd.f32 0.0, %v1566
        %v1568 = vpop.f32.mrb[0].mxu0
        %v1569 = vpop.f32.mrb[0].mxu0
        %v1570 = vpop.f32.mrb[0].mxu0
        %1571 = vdwg.mxu0
        %v1588 = vunpack.c.l.b16 %v1450
        %v1589 = vunpack.c.l.b16 %v1451
        %v1590 = vunpack.c.l.b16 %v1452
        %v1591 = vunpack.c.l.b16 %v1453
        %v1592 = vunpack.c.l.b16 %v1454
        %v1593 = vunpack.c.l.b16 %v1455
        %v1594 = vunpack.c.l.b16 %v1456
        %v1595 = vunpack.c.l.b16 %v1457
        %v1596 = vunpack.c.l.b16 %v1458
        %v1597 = vunpack.c.l.b16 %v1459
        %v1598 = vunpack.c.l.b16 %v1460
        %v1599 = vunpack.c.l.b16 %v1461
        %v1600 = vunpack.c.l.b16 %v1462
        %v1601 = vunpack.c.l.b16 %v1463
        %v1602 = vunpack.c.l.b16 %v1464
        %v1603 = vunpack.c.l.b16 %v1465
        %v1604 = vpack.c.b16 %v1589, %v1588
        %v1605 = vpack.c.b16 %v1591, %v1590
        %v1606 = vpack.c.b16 %v1593, %v1592
        %v1607 = vpack.c.b16 %v1595, %v1594
        %v1608 = vpack.c.b16 %v1597, %v1596
        %v1609 = vpack.c.b16 %v1599, %v1598
        %v1610 = vpack.c.b16 %v1601, %v1600
        %v1611 = vpack.c.b16 %v1603, %v1602
        %1620 = vmatprep.subr.bf16.mxu0 0
        %1621 = vmatpush1.bf16.msra.mxu0 %v1604
        %1622 = vmatprep.subr.bf16.mxu0 0
        %1623 = vmatpush1.bf16.msra.mxu0 %v1605
        %1624 = vmatprep.subr.bf16.mxu0 0
        %1625 = vmatpush1.bf16.msra.mxu0 %v1606
        %1626 = vmatprep.subr.bf16.mxu0 0
        %1627 = vmatpush1.bf16.msra.mxu0 %v1607
        %1628 = vmatprep.subr.bf16.mxu0 0
        %1629 = vmatpush1.bf16.msra.mxu0 %v1608
        %1630 = vmatprep.subr.bf16.mxu0 0
        %1631 = vmatpush1.bf16.msra.mxu0 %v1609
        %1632 = vmatprep.subr.bf16.mxu0 0
        %1633 = vmatpush1.bf16.msra.mxu0 %v1610
        %1634 = vmatprep.subr.bf16.mxu0 0
        %1635 = vmatpush1.bf16.msra.mxu0 %v1611
        %1636 = vmatprep.subr.bf16.mxu0 0
        %1637 = vmatpush1.bf16.msra.mxu0 0
        %1638 = vmatprep.subr.bf16.mxu0 0
        %1639 = vmatpush1.bf16.msra.mxu0 0
        %1640 = vmatprep.subr.bf16.mxu0 0
        %1641 = vmatpush1.bf16.msra.mxu0 0
        %1642 = vmatprep.subr.bf16.mxu0 0
        %1643 = vmatpush1.bf16.msra.mxu0 0
        %1644 = vmatprep.subr.bf16.mxu0 0
        %1645 = vmatpush1.bf16.msra.mxu0 0
        %1646 = vmatprep.subr.bf16.mxu0 0
        %1647 = vmatpush1.bf16.msra.mxu0 0
        %1648 = vmatprep.subr.bf16.mxu0 0
        %1649 = vmatpush1.bf16.msra.mxu0 0
        %1650 = vmatprep.subr.bf16.mxu0 0
        %1651 = vmatpush1.bf16.msra.mxu0 0
        %1652 = vmatprep.mubr.bf16.mxu0 0
        %1653 = vmatmul.mubr.bf16.gmra.mrb[0].mxu0 %v1448
        %v1654 = vpop.f32.mrb[0].mxu0
        %v1655 = vadd.f32 %v1567, %v1654
        %v1656 = vpop.f32.mrb[0].mxu0
        %v1657 = vpop.f32.mrb[0].mxu0
        %v1658 = vpop.f32.mrb[0].mxu0
        %1659 = vdwg.mxu0
        %v1660 = vpack.c.bf16 %v1447, %v1447
        %s1661 = scalar_lea.vmem %s2, 512
        %v1662 = vld [vmem:[%s1661] sm:$0xf]
        %v1663 = vld [vmem:[%s1661 + $0x4] sm:$0xf]
        %v1664 = vld [vmem:[%s1661 + $0x8] sm:$0xf]
        %v1665 = vld [vmem:[%s1661 + $0xc] sm:$0xf]
        %v1666 = vld [vmem:[%s1661 + $0x10] sm:$0xf]
        %v1667 = vld [vmem:[%s1661 + $0x14] sm:$0xf]
        %v1668 = vld [vmem:[%s1661 + $0x18] sm:$0xf]
        %v1669 = vld [vmem:[%s1661 + $0x1c] sm:$0xf]
        %v1670 = vld [vmem:[%s1661 + $0x20] sm:$0xf]
        %v1671 = vld [vmem:[%s1661 + $0x24] sm:$0xf]
        %v1672 = vld [vmem:[%s1661 + $0x28] sm:$0xf]
        %v1673 = vld [vmem:[%s1661 + $0x2c] sm:$0xf]
        %v1674 = vld [vmem:[%s1661 + $0x30] sm:$0xf]
        %v1675 = vld [vmem:[%s1661 + $0x34] sm:$0xf]
        %v1676 = vld [vmem:[%s1661 + $0x38] sm:$0xf]
        %v1677 = vld [vmem:[%s1661 + $0x3c] sm:$0xf]
        %v1694 = vunpack.c.l.b16 %v1662
        %v1695 = vunpack.c.l.b16 %v1663
        %v1696 = vunpack.c.l.b16 %v1664
        %v1697 = vunpack.c.l.b16 %v1665
        %v1698 = vunpack.c.l.b16 %v1666
        %v1699 = vunpack.c.l.b16 %v1667
        %v1700 = vunpack.c.l.b16 %v1668
        %v1701 = vunpack.c.l.b16 %v1669
        %v1702 = vunpack.c.l.b16 %v1670
        %v1703 = vunpack.c.l.b16 %v1671
        %v1704 = vunpack.c.l.b16 %v1672
        %v1705 = vunpack.c.l.b16 %v1673
        %v1706 = vunpack.c.l.b16 %v1674
        %v1707 = vunpack.c.l.b16 %v1675
        %v1708 = vunpack.c.l.b16 %v1676
        %v1709 = vunpack.c.l.b16 %v1677
        %v1710 = vpack.c.b16 %v1695, %v1694
        %v1711 = vpack.c.b16 %v1697, %v1696
        %v1712 = vpack.c.b16 %v1699, %v1698
        %v1713 = vpack.c.b16 %v1701, %v1700
        %v1714 = vpack.c.b16 %v1703, %v1702
        %v1715 = vpack.c.b16 %v1705, %v1704
        %v1716 = vpack.c.b16 %v1707, %v1706
        %v1717 = vpack.c.b16 %v1709, %v1708
        %1726 = vmatprep.subr.bf16.mxu0 0
        %1727 = vmatpush1.bf16.msra.mxu0 %v1710
        %1728 = vmatprep.subr.bf16.mxu0 0
        %1729 = vmatpush1.bf16.msra.mxu0 %v1711
        %1730 = vmatprep.subr.bf16.mxu0 0
        %1731 = vmatpush1.bf16.msra.mxu0 %v1712
        %1732 = vmatprep.subr.bf16.mxu0 0
        %1733 = vmatpush1.bf16.msra.mxu0 %v1713
        %1734 = vmatprep.subr.bf16.mxu0 0
        %1735 = vmatpush1.bf16.msra.mxu0 %v1714
        %1736 = vmatprep.subr.bf16.mxu0 0
        %1737 = vmatpush1.bf16.msra.mxu0 %v1715
        %1738 = vmatprep.subr.bf16.mxu0 0
        %1739 = vmatpush1.bf16.msra.mxu0 %v1716
        %1740 = vmatprep.subr.bf16.mxu0 0
        %1741 = vmatpush1.bf16.msra.mxu0 %v1717
        %1742 = vmatprep.subr.bf16.mxu0 0
        %1743 = vmatpush1.bf16.msra.mxu0 0
        %1744 = vmatprep.subr.bf16.mxu0 0
        %1745 = vmatpush1.bf16.msra.mxu0 0
        %1746 = vmatprep.subr.bf16.mxu0 0
        %1747 = vmatpush1.bf16.msra.mxu0 0
        %1748 = vmatprep.subr.bf16.mxu0 0
        %1749 = vmatpush1.bf16.msra.mxu0 0
        %1750 = vmatprep.subr.bf16.mxu0 0
        %1751 = vmatpush1.bf16.msra.mxu0 0
        %1752 = vmatprep.subr.bf16.mxu0 0
        %1753 = vmatpush1.bf16.msra.mxu0 0
        %1754 = vmatprep.subr.bf16.mxu0 0
        %1755 = vmatpush1.bf16.msra.mxu0 0
        %1756 = vmatprep.subr.bf16.mxu0 0
        %1757 = vmatpush1.bf16.msra.mxu0 0
        %1758 = vmatprep.mubr.bf16.mxu0 0
        %1759 = vmatmul.mubr.bf16.gmra.mrb[0].mxu0 %v1660
        %v1760 = vpop.f32.mrb[0].mxu0
        %v1761 = vadd.f32 0.0, %v1760
        %v1762 = vpop.f32.mrb[0].mxu0
        %v1763 = vpop.f32.mrb[0].mxu0
        %v1764 = vpop.f32.mrb[0].mxu0
        %1765 = vdwg.mxu0
        %v1766 = vadd.f32 %v1655, %v1761
        %v1767 = vld [vmem:[%s4 + $0x3] sm:$0x1]
        %v1768 = vlaneseq
        %v1769 = vshrl.u32 %v1768, 7
        %v1770 = vsub.s32 0, %v1769
        %v1771 = vrot.slane %v1767, %v1770
        %v1772 = vadd.f32 %v1766, %v1771
        %v1773 = vmax.f32 %v1772, 0.0
        %v1774 = vadd.f32 %v1773, %v1443
        %v1775 = vpack.c.bf16 %v1774, %v1774
        %v1776 = vld [vmem:[%s3] sm:$0xf]
        %v1777 = vld [vmem:[%s3 + $0x4] sm:$0xf]
        %v1778 = vld [vmem:[%s3 + $0x8] sm:$0xf]
        %v1779 = vld [vmem:[%s3 + $0xc] sm:$0xf]
        %v1780 = vld [vmem:[%s3 + $0x10] sm:$0xf]
        %v1781 = vld [vmem:[%s3 + $0x14] sm:$0xf]
        %v1782 = vld [vmem:[%s3 + $0x18] sm:$0xf]
        %v1783 = vld [vmem:[%s3 + $0x1c] sm:$0xf]
        %v1784 = vld [vmem:[%s3 + $0x20] sm:$0xf]
        %v1785 = vld [vmem:[%s3 + $0x24] sm:$0xf]
        %v1786 = vld [vmem:[%s3 + $0x28] sm:$0xf]
        %v1787 = vld [vmem:[%s3 + $0x2c] sm:$0xf]
        %v1788 = vld [vmem:[%s3 + $0x30] sm:$0xf]
        %v1789 = vld [vmem:[%s3 + $0x34] sm:$0xf]
        %v1790 = vld [vmem:[%s3 + $0x38] sm:$0xf]
        %v1791 = vld [vmem:[%s3 + $0x3c] sm:$0xf]
        %v1792 = vld [vmem:[%s4 + $0x4] sm:$0x1]
        %v1793 = vlaneseq
        %v1794 = vshrl.u32 %v1793, 7
        %v1795 = vsub.s32 0, %v1794
        %v1796 = vrot.slane %v1792, %v1795
        %v1813 = vunpack.c.l.b16 %v1776
        %v1814 = vunpack.c.l.b16 %v1777
        %v1815 = vunpack.c.l.b16 %v1778
        %v1816 = vunpack.c.l.b16 %v1779
        %v1817 = vunpack.c.l.b16 %v1780
        %v1818 = vunpack.c.l.b16 %v1781
        %v1819 = vunpack.c.l.b16 %v1782
        %v1820 = vunpack.c.l.b16 %v1783
        %v1821 = vunpack.c.l.b16 %v1784
        %v1822 = vunpack.c.l.b16 %v1785
        %v1823 = vunpack.c.l.b16 %v1786
        %v1824 = vunpack.c.l.b16 %v1787
        %v1825 = vunpack.c.l.b16 %v1788
        %v1826 = vunpack.c.l.b16 %v1789
        %v1827 = vunpack.c.l.b16 %v1790
        %v1828 = vunpack.c.l.b16 %v1791
        %v1829 = vpack.c.b16 %v1814, %v1813
        %v1830 = vpack.c.b16 %v1816, %v1815
        %v1831 = vpack.c.b16 %v1818, %v1817
        %v1832 = vpack.c.b16 %v1820, %v1819
        %v1833 = vpack.c.b16 %v1822, %v1821
        %v1834 = vpack.c.b16 %v1824, %v1823
        %v1835 = vpack.c.b16 %v1826, %v1825
        %v1836 = vpack.c.b16 %v1828, %v1827
        %1845 = vmatprep.subr.bf16.mxu0 0
        %1846 = vmatpush1.bf16.msra.mxu0 %v1829
        %1847 = vmatprep.subr.bf16.mxu0 0
        %1848 = vmatpush1.bf16.msra.mxu0 %v1830
        %1849 = vmatprep.subr.bf16.mxu0 0
        %1850 = vmatpush1.bf16.msra.mxu0 %v1831
        %1851 = vmatprep.subr.bf16.mxu0 0
        %1852 = vmatpush1.bf16.msra.mxu0 %v1832
        %1853 = vmatprep.subr.bf16.mxu0 0
        %1854 = vmatpush1.bf16.msra.mxu0 %v1833
        %1855 = vmatprep.subr.bf16.mxu0 0
        %1856 = vmatpush1.bf16.msra.mxu0 %v1834
        %1857 = vmatprep.subr.bf16.mxu0 0
        %1858 = vmatpush1.bf16.msra.mxu0 %v1835
        %1859 = vmatprep.subr.bf16.mxu0 0
        %1860 = vmatpush1.bf16.msra.mxu0 %v1836
        %1861 = vmatprep.subr.bf16.mxu0 0
        %1862 = vmatpush1.bf16.msra.mxu0 0
        %1863 = vmatprep.subr.bf16.mxu0 0
        %1864 = vmatpush1.bf16.msra.mxu0 0
        %1865 = vmatprep.subr.bf16.mxu0 0
        %1866 = vmatpush1.bf16.msra.mxu0 0
        %1867 = vmatprep.subr.bf16.mxu0 0
        %1868 = vmatpush1.bf16.msra.mxu0 0
        %1869 = vmatprep.subr.bf16.mxu0 0
        %1870 = vmatpush1.bf16.msra.mxu0 0
        %1871 = vmatprep.subr.bf16.mxu0 0
        %1872 = vmatpush1.bf16.msra.mxu0 0
        %1873 = vmatprep.subr.bf16.mxu0 0
        %1874 = vmatpush1.bf16.msra.mxu0 0
        %1875 = vmatprep.subr.bf16.mxu0 0
        %1876 = vmatpush1.bf16.msra.mxu0 0
        %1877 = vmatprep.mubr.bf16.mxu0 0
        %1878 = vmatmul.mubr.bf16.gmra.mrb[0].mxu0 %v1775
        %v1879 = vpop.f32.mrb[0].mxu0
        %v1880 = vadd.f32 %v1796, %v1879
        %v1881 = vpop.f32.mrb[0].mxu0
        %v1882 = vpop.f32.mrb[0].mxu0
        %v1883 = vpop.f32.mrb[0].mxu0
        %1884 = vdwg.mxu0
        %1885 = vst [vmem:[%s237] sm:$0xff] %v1880
        %p1886 = scmp.lt.s32.totalorder %s17, 1
        %s1887 = scalar_select %p1886, %s17, 1
        %s1888 = smul.addr %s1887, 8
        %s1889 = scalar_lea.vmem %s5, %s1888
        // Predicated region
        $region45: #{model_forward.1} parent=39 // pred_check
          %p1890 = pneg %p145
        $region46: #{model_forward.1} parent=39 // pred_check_branch
          %1892 = sbr.rel (%p1890) target = $region48
        $region47: #{model_forward.1} parent=39 // pred_region
          _
        $region48: #{model_forward.1} parent=39 // pred_fallthru
          _
      $region40: #{model_forward.1} parent=5 // pred_fallthru
        _
      %p1893 = scmp.le.s32.totalorder 2, %s12
      // Predicated region
      $region49: #{model_forward.1} parent=5 // pred_check
        %p1894 = pneg %p1893
      $region50: #{model_forward.1} parent=5 // pred_check_branch
        %1896 = sbr.rel (%p1894) target = $region52
      $region51: #{model_forward.1} parent=5 // pred_region
        %s1897 = ssub.s32 %s12, 2
        // Predicated region
        $region53: #{model_forward.1} parent=51 // pred_check
          %p1898 = pneg %p151
        $region54: #{model_forward.1} parent=51 // pred_check_branch
          %1900 = sbr.rel (%p1898) target = $region56
        $region55: #{model_forward.1} parent=51 // pred_region
          %p1901 = scmp.lt.s32.totalorder %s18, 1
          %s1902 = scalar_select %p1901, %s18, 1
          %s1903 = smul.addr %s1902, 8
          %s1904 = scalar_lea.vmem %s5, %s1903
        $region56: #{model_forward.1} parent=51 // pred_fallthru
          _
      $region52: #{model_forward.1} parent=5 // pred_fallthru
        _
    $region6: #{model_forward.1} parent=1 // loop_footer
      %s16 = sadd.s32 1, %s12
    $region7: #{model_forward.1} parent=1 // loop_footer_branch
      %11 = sbr.rel target = $region3
    $region8: #{model_forward.1} parent=1 // loop_exit
      _
    %1905 = vsyncpa [#allocation3], 1
    %s1906 = scalar_lea.sflag [#allocation3], 1
    %1907 = vsyncpa %s1906, 1

</llo_original>
